<compile_context>
chip_gen: v7x
topology: tpu7x:2x2x1
jax: 0.10.0
libtpu: 0.0.40
codegen_flags: <defaults>
</compile_context>

<pallas_src>
import functools

import jax
import jax.numpy as jnp
from jax import lax
from jax.experimental import pallas as pl
from jax.experimental.pallas import tpu as pltpu

EPS = 1e-5
MXU_DTYPE = jnp.bfloat16          # matmul operand dtype (accumulation is always f32)
LANES = 128
VMEM_LIMIT = 32 * 1024 * 1024     # explicit scoped-VMEM budget (fits v7x with headroom)


# --------------------------- in-kernel helpers ---------------------------------------
def _pad_hw(x):
    """Zero-pad an (H, W, C) tile by 1 on each spatial side (halo only, no full zero fill)."""
    H, W, C = x.shape
    zr = jnp.zeros((1, W, C), x.dtype)
    x = jnp.concatenate([zr, x, zr], axis=0)              # (H+2, W,   C)
    zc = jnp.zeros((H + 2, 1, C), x.dtype)
    return jnp.concatenate([zc, x, zc], axis=1)           # (H+2, W+2, C)


def _im2col_3x3(x, ho, wo, stride):
    """(H, W, C) -> (ho*wo, 9*C) patches of a 3x3 / pad=1 / stride `stride` convolution."""
    C = x.shape[-1]
    xp = _pad_hw(x)
    taps = []
    for kh in range(3):
        for kw in range(3):
            t = xp[kh:kh + (ho - 1) * stride + 1:stride,
                   kw:kw + (wo - 1) * stride + 1:stride, :]
            taps.append(t.reshape(ho * wo, C))
    return jnp.concatenate(taps, axis=-1)                 # (ho*wo, 9*C)


# --------------------------------- kernels -------------------------------------------
def _conv1_stats_kernel(x_ref, w1_ref, y1_ref, st_ref, *, stride):
    """conv1 (bias omitted: it cancels exactly in training-mode BN) + per-sample moments."""
    _, ho, wo, cp = y1_ref.shape
    patches = _im2col_3x3(x_ref[0], ho, wo, stride).astype(MXU_DTYPE)    # (M, 9*Cin)
    acc = jnp.dot(patches, w1_ref[...], preferred_element_type=jnp.float32)  # (M, CP) f32
    y1_ref[0] = acc.reshape(ho, wo, cp)
    s = jnp.sum(acc, axis=0, keepdims=True)
    ss = jnp.sum(acc * acc, axis=0, keepdims=True)
    st_ref[0] = jnp.concatenate([s, ss], axis=0)                         # (2, CP)


def _bn1_conv2_stats_kernel(y1_ref, sc1_ref, sh1_ref, w2_ref, y2_ref, st_ref):
    """bn1 + relu + conv2 (bias omitted) + per-sample moments."""
    _, ho, wo, cp = y2_ref.shape
    m = ho * wo
    cout = w2_ref.shape[0] // 9
    y1 = y1_ref[0].reshape(m, cp)
    a = jnp.maximum(y1 * sc1_ref[...] + sh1_ref[...], 0.0)               # f32 BN + relu
    a = a[:, :cout].reshape(ho, wo, cout)        # drop zero-padded lanes for the contraction
    patches = _im2col_3x3(a, ho, wo, 1).astype(MXU_DTYPE)                # (M, 9*Cout)
    acc = jnp.dot(patches, w2_ref[...], preferred_element_type=jnp.float32)
    y2_ref[0] = acc.reshape(ho, wo, cp)
    s = jnp.sum(acc, axis=0, keepdims=True)
    ss = jnp.sum(acc * acc, axis=0, keepdims=True)
    st_ref[0] = jnp.concatenate([s, ss], axis=0)


def _bn2_add_proj_kernel(y2_ref, sc2_ref, sh2_ref, xs_ref, ws_ref, bs_ref, out_ref):
    """bn2 + 1x1-conv projection shortcut + residual add + relu."""
    _, ho, wo, cp = out_ref.shape
    m = ho * wo
    cin = xs_ref.shape[-1]
    y2 = y2_ref[0].reshape(m, cp) * sc2_ref[...] + sh2_ref[...]
    xs = xs_ref[0].reshape(m, cin).astype(MXU_DTYPE)
    sc = jnp.dot(xs, ws_ref[...], preferred_element_type=jnp.float32) + bs_ref[...]
    out_ref[0] = jnp.maximum(y2 + sc, 0.0).reshape(ho, wo, cp)


def _bn2_add_identity_kernel(y2_ref, sc2_ref, sh2_ref, xs_ref, out_ref):
    """bn2 + identity shortcut (no matmul) + residual add + relu."""
    _, ho, wo, cp = out_ref.shape
    m = ho * wo
    y2 = y2_ref[0].reshape(m, cp) * sc2_ref[...] + sh2_ref[...]
    out_ref[0] = jnp.maximum(y2 + xs_ref[0].reshape(m, cp), 0.0).reshape(ho, wo, cp)


# --------------------------------- wrapper -------------------------------------------
def _bn_affine(stats, gamma_p, beta_p, count):
    """Reduce per-sample (sum, sumsq) moments -> per-channel BN scale/shift (f32)."""
    s = jnp.sum(stats[:, 0, :], axis=0)
    ss = jnp.sum(stats[:, 1, :], axis=0)
    mean = s / count
    var = jnp.maximum(ss / count - mean * mean, 0.0)      # one-pass variance
    scale = gamma_p * lax.rsqrt(var + EPS)
    shift = beta_p - mean * scale
    return (scale.reshape(1, -1).astype(jnp.float32),
            shift.reshape(1, -1).astype(jnp.float32))


def residual_block_forward(x_nchw, params, *, stride=1):
    """NCHW in / NCHW out, matching ResidualBlock.forward in training mode."""
    N, Cin, H, W = x_nchw.shape
    Cout = params["w1"].shape[0]
    identity_shortcut = (Cin == Cout)
    if identity_shortcut and stride != 1:
        raise ValueError("identity shortcut (in_channels == out_channels) requires stride == 1")
    Ho = (H + 2 - 3) // stride + 1
    Wo = (W + 2 - 3) // stride + 1
    M = N * Ho * Wo
    CP = ((Cout + LANES - 1) // LANES) * LANES            # lane-dense channel padding

    x = jnp.transpose(x_nchw, (0, 2, 3, 1)).astype(jnp.float32)          # NHWC

    def pad_c(v):                                         # (..., Cout) -> (..., CP)
        return jnp.pad(v, [(0, 0)] * (v.ndim - 1) + [(0, CP - Cout)])

    def conv_w(w):                                        # OIHW -> (9*I, CP), im2col order
        o, i = w.shape[0], w.shape[1]
        wm = jnp.transpose(w, (2, 3, 1, 0)).reshape(9 * i, o)
        return pad_c(wm).astype(MXU_DTYPE)

    w1p = conv_w(params["w1"].astype(jnp.float32))        # (9*Cin,  CP)
    w2p = conv_w(params["w2"].astype(jnp.float32))        # (9*Cout, CP)
    g1p = pad_c(params["g1"].astype(jnp.float32))
    be1p = pad_c(params["be1"].astype(jnp.float32))
    g2p = pad_c(params["g2"].astype(jnp.float32))
    be2p = pad_c(params["be2"].astype(jnp.float32))

    cparams = pltpu.CompilerParams(dimension_semantics=("parallel",),
                                   vmem_limit_bytes=VMEM_LIMIT)

    # ---- pass 1: conv1 + partial BN1 moments ----------------------------------------
    cost1 = pl.CostEstimate(flops=2 * M * (9 * Cin) * CP + 4 * M * CP,
                            transcendentals=0,
                            bytes_accessed=x.size * 4 + w1p.size * 2
                            + M * CP * 4 + N * 2 * CP * 4)
    y1_raw, st1 = pl.pallas_call(
        functools.partial(_conv1_stats_kernel, stride=stride),
        out_shape=(jax.ShapeDtypeStruct((N, Ho, Wo, CP), jnp.float32),
                   jax.ShapeDtypeStruct((N, 2, CP), jnp.float32)),
        grid_spec=pltpu.PrefetchScalarGridSpec(
            num_scalar_prefetch=0, grid=(N,),
            in_specs=[pl.BlockSpec((1, H, W, Cin), lambda n: (n, 0, 0, 0)),
                      pl.BlockSpec((9 * Cin, CP), lambda n: (0, 0))],
            out_specs=[pl.BlockSpec((1, Ho, Wo, CP), lambda n: (n, 0, 0, 0)),
                       pl.BlockSpec((1, 2, CP), lambda n: (n, 0, 0))]),
        compiler_params=cparams, cost_estimate=cost1,
    )(x, w1p)

    sc1, sh1 = _bn_affine(st1, g1p, be1p, M)

    # ---- pass 2: bn1 + relu + conv2 + partial BN2 moments ----------------------------
    cost2 = pl.CostEstimate(flops=2 * M * (9 * Cout) * CP + 8 * M * CP,
                            transcendentals=0,
                            bytes_accessed=2 * M * CP * 4 + w2p.size * 2 + N * 2 * CP * 4)
    y2_raw, st2 = pl.pallas_call(
        _bn1_conv2_stats_kernel,
        out_shape=(jax.ShapeDtypeStruct((N, Ho, Wo, CP), jnp.float32),
                   jax.ShapeDtypeStruct((N, 2, CP), jnp.float32)),
        grid_spec=pltpu.PrefetchScalarGridSpec(
            num_scalar_prefetch=0, grid=(N,),
            in_specs=[pl.BlockSpec((1, Ho, Wo, CP), lambda n: (n, 0, 0, 0)),
                      pl.BlockSpec((1, CP), lambda n: (0, 0)),
                      pl.BlockSpec((1, CP), lambda n: (0, 0)),
                      pl.BlockSpec((9 * Cout, CP), lambda n: (0, 0))],
            out_specs=[pl.BlockSpec((1, Ho, Wo, CP), lambda n: (n, 0, 0, 0)),
                       pl.BlockSpec((1, 2, CP), lambda n: (n, 0, 0))]),
        compiler_params=cparams, cost_estimate=cost2,
    )(y1_raw, sc1, sh1, w2p)

    sc2, sh2 = _bn_affine(st2, g2p, be2p, M)

    # ---- pass 3: bn2 + shortcut + residual add + relu --------------------------------
    out_shape = jax.ShapeDtypeStruct((N, Ho, Wo, CP), jnp.float32)
    big_spec = pl.BlockSpec((1, Ho, Wo, CP), lambda n: (n, 0, 0, 0))
    vec_spec = pl.BlockSpec((1, CP), lambda n: (0, 0))

    if identity_shortcut:
        xs = pad_c(x)                                                    # (N, Ho, Wo, CP)
        cost3 = pl.CostEstimate(flops=4 * M * CP, transcendentals=0,
                                bytes_accessed=3 * M * CP * 4)
        out_p = pl.pallas_call(
            _bn2_add_identity_kernel,
            out_shape=out_shape,
            grid_spec=pltpu.PrefetchScalarGridSpec(
                num_scalar_prefetch=0, grid=(N,),
                in_specs=[big_spec, vec_spec, vec_spec,
                          pl.BlockSpec((1, Ho, Wo, CP), lambda n: (n, 0, 0, 0))],
                out_specs=big_spec),
            compiler_params=cparams, cost_estimate=cost3,
        )(y2_raw, sc2, sh2, xs)
    else:
        xs = x[:, ::stride, ::stride, :][:, :Ho, :Wo, :]                 # (N, Ho, Wo, Cin)
        wsp = pad_c(jnp.transpose(params["ws"][:, :, 0, 0], (1, 0))
                    .astype(jnp.float32)).astype(MXU_DTYPE)              # (Cin, CP)
        bsp = pad_c(params["bs"].astype(jnp.float32)).reshape(1, CP)
        cost3 = pl.CostEstimate(flops=2 * M * Cin * CP + 4 * M * CP, transcendentals=0,
                                bytes_accessed=2 * M * CP * 4 + xs.size * 4)
        out_p = pl.pallas_call(
            _bn2_add_proj_kernel,
            out_shape=out_shape,
            grid_spec=pltpu.PrefetchScalarGridSpec(
                num_scalar_prefetch=0, grid=(N,),
                in_specs=[big_spec, vec_spec, vec_spec,
                          pl.BlockSpec((1, Ho, Wo, Cin), lambda n: (n, 0, 0, 0)),
                          pl.BlockSpec((Cin, CP), lambda n: (0, 0)),
                          vec_spec],
                out_specs=big_spec),
            compiler_params=cparams, cost_estimate=cost3,
        )(y2_raw, sc2, sh2, xs, wsp, bsp)

    return jnp.transpose(out_p[..., :Cout], (0, 3, 1, 2))                # back to NCHW


# --------------------------- pure-JAX reference (for checking) -----------------------
def _bn_train(y, g, b):
    mu = y.mean(axis=(0, 2, 3), keepdims=True)
    var = ((y - mu) ** 2).mean(axis=(0, 2, 3), keepdims=True)
    return (y - mu) * lax.rsqrt(var + EPS) * g[None, :, None, None] + b[None, :, None, None]


def reference_forward(x, p, stride=1):
    dn = ("NCHW", "OIHW", "NCHW")

    def conv(v, w, s, pad):     # same MXU operand precision as the kernel, f32 accumulation
        return lax.conv_general_dilated(v.astype(MXU_DTYPE), w.astype(MXU_DTYPE), (s, s), pad,
                                        dimension_numbers=dn,
                                        preferred_element_type=jnp.float32)

    y = conv(x, p["w1"], stride, ((1, 1), (1, 1))) + p["b1"][None, :, None, None]
    y = jnp.maximum(_bn_train(y, p["g1"], p["be1"]), 0.0)
    y = conv(y, p["w2"], 1, ((1, 1), (1, 1))) + p["b2"][None, :, None, None]
    y = _bn_train(y, p["g2"], p["be2"])
    if x.shape[1] != p["w1"].shape[0]:
        sc = conv(x, p["ws"], stride, ((0, 0), (0, 0))) + p["bs"][None, :, None, None]
    else:
        sc = x
    return jnp.maximum(y + sc, 0.0)


def _make_params(key, cin, cout):
    ks = jax.random.split(key, 6)
    p = {
        "w1": 0.1 * jax.random.normal(ks[0], (cout, cin, 3, 3), jnp.float32),
        "b1": 0.1 * jax.random.normal(ks[1], (cout,), jnp.float32),
        "g1": jnp.ones((cout,), jnp.float32),    # BatchNorm default init
        "be1": jnp.zeros((cout,), jnp.float32),
        "w2": 0.1 * jax.random.normal(ks[2], (cout, cout, 3, 3), jnp.float32),
        "b2": 0.1 * jax.random.normal(ks[3], (cout,), jnp.float32),
        "g2": jnp.ones((cout,), jnp.float32),
        "be2": jnp.zeros((cout,), jnp.float32),
    }
    if cin != cout:
        p["ws"] = 0.1 * jax.random.normal(ks[4], (cout, cin, 1, 1), jnp.float32)
        p["bs"] = 0.1 * jax.random.normal(ks[5], (cout,), jnp.float32)
    return p


if __name__ == "__main__":
    key = jax.random.PRNGKey(0)
    kx1, kp1, kx2, kp2 = jax.random.split(key, 4)
    TOL = 2e-2   # bf16 MXU operands + bias-cancellation reassociation vs f32-pipeline reference

    # ---- projection-shortcut case (in_channels != out_channels) ----
    N, Cin, Cout, H, W, stride = 2, 4, 8, 16, 16, 1
    params = _make_params(kp1, Cin, Cout)
    x = jax.random.normal(kx1, (N, Cin, H, W), jnp.float32)
    out = jax.block_until_ready(residual_block_forward(x, params, stride=stride))
    ref = reference_forward(x, params, stride=stride)
    assert out.shape == ref.shape == (N, Cout, H, W)
    err = float(jnp.max(jnp.abs(out - ref)))
    if err > TOL:
        raise AssertionError(f"projection case mismatch vs reference: max abs err {err}")

    # ---- identity-shortcut case (in_channels == out_channels): no shortcut matmul ----
    params_id = _make_params(kp2, Cout, Cout)
    x_id = jax.random.normal(kx2, (N, Cout, H, W), jnp.float32)
    out_id = jax.block_until_ready(residual_block_forward(x_id, params_id, stride=1))
    ref_id = reference_forward(x_id, params_id, stride=1)
    err_id = float(jnp.max(jnp.abs(out_id - ref_id)))
    if err_id > TOL:
        raise AssertionError(f"identity case mismatch vs reference: max abs err {err_id}")

    print("KERNEL_OK")
</pallas_src>

<mosaic_0001>
module attributes {stable_mosaic.version = 11 : i64} {
  func.func @_conv1_stats_kernel(%arg0: i32, %arg1: memref<1x16x16x4xf32, #tpu.memory_space<vmem>>, %arg2: memref<36x128xbf16, #tpu.memory_space<vmem>>, %arg3: memref<1x16x16x128xf32, #tpu.memory_space<vmem>>, %arg4: memref<1x2x128xf32, #tpu.memory_space<vmem>>) attributes {dimension_semantics = [#tpu.dimension_semantics<parallel>], iteration_bounds = array<i64: 2>, scalar_prefetch = 0 : i64, scratch_operands = 0 : i64, tpu.core_type = #tpu.core_type<tc>, window_params = [{transform_indices = @transform_0, window_bounds = array<i64: 1, 16, 16, 4>}, {pipeline_mode = #tpu.pipeline_mode<synchronous>, transform_indices = @transform_1, window_bounds = array<i64: 36, 128>}, {transform_indices = @transform_2, window_bounds = array<i64: 1, 16, 16, 128>}, {transform_indices = @transform_3, window_bounds = array<i64: 1, 2, 128>}]} {
    %c0 = arith.constant 0 : index
    %c0_0 = arith.constant 0 : index
    %c0_1 = arith.constant 0 : index
    %c0_2 = arith.constant 0 : index
    %0 = vector.load %arg1[%c0, %c0_0, %c0_1, %c0_2] : memref<1x16x16x4xf32, #tpu.memory_space<vmem>>, vector<1x16x16x4xf32>
    %1 = vector.shape_cast %0 : vector<1x16x16x4xf32> to vector<16x16x4xf32>
    %cst = arith.constant 0.000000e+00 : f32
    %2 = vector.broadcast %cst : f32 to vector<1x16x4xf32>
    %3 = tpu.concatenate %2, %1, %2 in 0 : vector<1x16x4xf32>, vector<16x16x4xf32>, vector<1x16x4xf32> -> vector<18x16x4xf32>
    %cst_3 = arith.constant 0.000000e+00 : f32
    %4 = vector.broadcast %cst_3 : f32 to vector<18x1x4xf32>
    %5 = tpu.concatenate %4, %3, %4 in 1 : vector<18x1x4xf32>, vector<18x16x4xf32>, vector<18x1x4xf32> -> vector<18x18x4xf32>
    %6 = vector.extract_strided_slice %5 {offsets = [0, 0, 0], sizes = [16, 16, 4], strides = [1, 1, 1]} : vector<18x18x4xf32> to vector<16x16x4xf32>
    %7 = vector.shape_cast %6 : vector<16x16x4xf32> to vector<256x4xf32>
    %8 = vector.extract_strided_slice %5 {offsets = [0, 1, 0], sizes = [16, 16, 4], strides = [1, 1, 1]} : vector<18x18x4xf32> to vector<16x16x4xf32>
    %9 = vector.shape_cast %8 : vector<16x16x4xf32> to vector<256x4xf32>
    %10 = vector.extract_strided_slice %5 {offsets = [0, 2, 0], sizes = [16, 16, 4], strides = [1, 1, 1]} : vector<18x18x4xf32> to vector<16x16x4xf32>
    %11 = vector.shape_cast %10 : vector<16x16x4xf32> to vector<256x4xf32>
    %12 = vector.extract_strided_slice %5 {offsets = [1, 0, 0], sizes = [16, 16, 4], strides = [1, 1, 1]} : vector<18x18x4xf32> to vector<16x16x4xf32>
    %13 = vector.shape_cast %12 : vector<16x16x4xf32> to vector<256x4xf32>
    %14 = vector.extract_strided_slice %5 {offsets = [1, 1, 0], sizes = [16, 16, 4], strides = [1, 1, 1]} : vector<18x18x4xf32> to vector<16x16x4xf32>
    %15 = vector.shape_cast %14 : vector<16x16x4xf32> to vector<256x4xf32>
    %16 = vector.extract_strided_slice %5 {offsets = [1, 2, 0], sizes = [16, 16, 4], strides = [1, 1, 1]} : vector<18x18x4xf32> to vector<16x16x4xf32>
    %17 = vector.shape_cast %16 : vector<16x16x4xf32> to vector<256x4xf32>
    %18 = vector.extract_strided_slice %5 {offsets = [2, 0, 0], sizes = [16, 16, 4], strides = [1, 1, 1]} : vector<18x18x4xf32> to vector<16x16x4xf32>
    %19 = vector.shape_cast %18 : vector<16x16x4xf32> to vector<256x4xf32>
    %20 = vector.extract_strided_slice %5 {offsets = [2, 1, 0], sizes = [16, 16, 4], strides = [1, 1, 1]} : vector<18x18x4xf32> to vector<16x16x4xf32>
    %21 = vector.shape_cast %20 : vector<16x16x4xf32> to vector<256x4xf32>
    %22 = vector.extract_strided_slice %5 {offsets = [2, 2, 0], sizes = [16, 16, 4], strides = [1, 1, 1]} : vector<18x18x4xf32> to vector<16x16x4xf32>
    %23 = vector.shape_cast %22 : vector<16x16x4xf32> to vector<256x4xf32>
    %24 = tpu.concatenate %7, %9, %11, %13, %15, %17, %19, %21, %23 in 1 : vector<256x4xf32>, vector<256x4xf32>, vector<256x4xf32>, vector<256x4xf32>, vector<256x4xf32>, vector<256x4xf32>, vector<256x4xf32>, vector<256x4xf32>, vector<256x4xf32> -> vector<256x36xf32>
    %25 = arith.truncf %24 : vector<256x36xf32> to vector<256x36xbf16>
    %c0_4 = arith.constant 0 : index
    %c0_5 = arith.constant 0 : index
    %26 = vector.load %arg2[%c0_4, %c0_5] : memref<36x128xbf16, #tpu.memory_space<vmem>>, vector<36x128xbf16>
    %cst_6 = arith.constant dense<0.000000e+00> : vector<256x128xf32>
    %27 = tpu.matmul %25, %26, %cst_6 {dimension_numbers = #tpu.dot_dimension_numbers<[1], [0], [0], [1], [0, 0, 1, 1], [], []>} : vector<256x36xbf16>, vector<36x128xbf16>, vector<256x128xf32> -> vector<256x128xf32>
    %28 = vector.shape_cast %27 : vector<256x128xf32> to vector<16x16x128xf32>
    %c0_7 = arith.constant 0 : index
    %c0_8 = arith.constant 0 : index
    %c0_9 = arith.constant 0 : index
    %c0_10 = arith.constant 0 : index
    %29 = vector.load %arg3[%c0_7, %c0_8, %c0_9, %c0_10] : memref<1x16x16x128xf32, #tpu.memory_space<vmem>>, vector<1x16x16x128xf32>
    %30 = vector.shape_cast %29 : vector<1x16x16x128xf32> to vector<16x16x128xf32>
    %31 = vector.shape_cast %28 : vector<16x16x128xf32> to vector<1x16x16x128xf32>
    tpu.vector_store %arg3[%c0_7, %c0_8, %c0_9, %c0_10], %31 {strides = array<i32>} : memref<1x16x16x128xf32, #tpu.memory_space<vmem>>, vector<1x16x16x128xf32>,
    %cst_11 = arith.constant dense<0.000000e+00> : vector<128xf32>
    %32 = vector.multi_reduction <add>, %27, %cst_11 [0] : vector<256x128xf32> to vector<128xf32>
    %33 = vector.shape_cast %32 : vector<128xf32> to vector<1x128xf32>
    %34 = arith.mulf %27, %27 : vector<256x128xf32>
    %cst_12 = arith.constant dense<0.000000e+00> : vector<128xf32>
    %35 = vector.multi_reduction <add>, %34, %cst_12 [0] : vector<256x128xf32> to vector<128xf32>
    %36 = vector.shape_cast %35 : vector<128xf32> to vector<1x128xf32>
    %37 = tpu.concatenate %33, %36 in 0 : vector<1x128xf32>, vector<1x128xf32> -> vector<2x128xf32>
    %c0_13 = arith.constant 0 : index
    %c0_14 = arith.constant 0 : index
    %c0_15 = arith.constant 0 : index
    %38 = vector.load %arg4[%c0_13, %c0_14, %c0_15] : memref<1x2x128xf32, #tpu.memory_space<vmem>>, vector<1x2x128xf32>
    %39 = vector.shape_cast %38 : vector<1x2x128xf32> to vector<2x128xf32>
    %40 = vector.shape_cast %37 : vector<2x128xf32> to vector<1x2x128xf32>
    tpu.vector_store %arg4[%c0_13, %c0_14, %c0_15], %40 {strides = array<i32>} : memref<1x2x128xf32, #tpu.memory_space<vmem>>, vector<1x2x128xf32>,
    return
  }
  func.func @transform_0(%arg0: i32) -> (i32, i32, i32, i32) {
    %c0_i32 = arith.constant 0 : i32
    %c0_i32_0 = arith.constant 0 : i32
    %c0_i32_1 = arith.constant 0 : i32
    %c0_i32_2 = arith.constant 0 : i32
    return %arg0, %c0_i32, %c0_i32_0, %c0_i32_1 : i32, i32, i32, i32
  }
  func.func @transform_1(%arg0: i32) -> (i32, i32) {
    %c0_i32 = arith.constant 0 : i32
    %c0_i32_0 = arith.constant 0 : i32
    %c0_i32_1 = arith.constant 0 : i32
    return %c0_i32, %c0_i32_0 : i32, i32
  }
  func.func @transform_2(%arg0: i32) -> (i32, i32, i32, i32) {
    %c0_i32 = arith.constant 0 : i32
    %c0_i32_0 = arith.constant 0 : i32
    %c0_i32_1 = arith.constant 0 : i32
    %c0_i32_2 = arith.constant 0 : i32
    return %arg0, %c0_i32, %c0_i32_0, %c0_i32_1 : i32, i32, i32, i32
  }
  func.func @transform_3(%arg0: i32) -> (i32, i32, i32) {
    %c0_i32 = arith.constant 0 : i32
    %c0_i32_0 = arith.constant 0 : i32
    %c0_i32_1 = arith.constant 0 : i32
    return %arg0, %c0_i32, %c0_i32_0 : i32, i32, i32
  }
}

</mosaic_0001>

<llo_original>
// kernel: tpu_custom_call.1
$region0: #{tpu_custom_call.1}
  #allocation0 [shape = 'u32[]', space=smem, size = 0x4, offset = 0x4, fixed_abs, tag = 'smem constant byte address 0x4 - core index']
  #allocation1 [shape = 'u32[144,128]{1,0:T(1,128)}', space=vmem, size = 0x12000, scoped, tag = 'internal scratch']
  %s0 = inlined_call_operand.vmem [shape: f32[2,16,16,4], index: 0, kind: input, shape index: {}]
  %s1 = inlined_call_operand.vmem [shape: bf16[36,128], index: 1, kind: input, shape index: {}]
  %s2 = inlined_call_operand.hbm [shape: f32[2,16,16,128], index: 2, kind: output, shape index: {0}]
  %s3 = inlined_call_operand.hbm [shape: f32[2,2,128], index: 3, kind: output, shape index: {1}]
  %4 = xla_tuple %s2, %s3
  %s5 = sld [smem:[#allocation0]]
  $region49: #{tpu_custom_call.1} parent=0
    _
  %s7 = ssub.s32 1, %s5
  %s8 = scalar_select 0, %s7, %s5
  $region1: #{tpu_custom_call.1} parent=0
    #allocation2 [shape = 'u8[262144]{0}', space=vmem, size = 0x40000, scoped, tag = 'output window, operand 0']
    #allocation3 [shape = 's32[2]{0}', space=sflag, size = 0x8, scoped, tag = 'scoped memory for tpu_custom_call.1']
    #allocation4 [shape = 'u8[2048]{0}', space=vmem, size = 0x800, scoped, tag = 'output window, operand 1']
    #allocation5 [shape = 's32[2]{0}', space=sflag, size = 0x8, scoped, tag = 'scoped memory for tpu_custom_call.1']
    %9 = vsyncpa [#allocation3], 0
    %s10 = scalar_lea.sflag [#allocation3], 1
    %11 = vsyncpa %s10, 0
    %12 = vsyncpa [#allocation5], 0
    %s13 = scalar_lea.sflag [#allocation5], 1
    %14 = vsyncpa %s13, 0
    loop: start=0, step=1, limit=4
    $region2: #{tpu_custom_call.1} parent=1 // loop_pre_header
      _
    $region3: #{tpu_custom_call.1} parent=1 // loop_header
      %s16 = sphi 0, %s20
      %p17 = scmp.ge.s32.totalorder %s16, 4
      %s26 = sphi 0, %s28
      %s29 = sphi 0, %s26
      %s30 = sphi 0, %s29
      %s46 = sphi 0, %s30
      %s50 = sphi 0, %s50
      %s52 = sphi 0, %s50
      %s53 = sphi 0, %s52
      %s67 = sphi 0, %s53
      %s73 = sphi 0, %s75
      %s76 = sphi 0, %s73
      %s77 = sphi 0, %s76
      %s93 = sphi 0, %s77
      %s99 = sphi 0, %s101
      %s102 = sphi 0, %s99
      %s103 = sphi 0, %s102
      %s119 = sphi 0, %s103
    $region4: #{tpu_custom_call.1} parent=1 // loop_header_branch
      %19 = sbr.rel (%p17) target = $region8
    $region5: #{tpu_custom_call.1} parent=1 // loop_body
      %s21 = ssub.s32 %s16, 1
      %s22 = ssub.s32 %s16, 2
      %s23 = sadd.s32 %s16, 1
      %s24 = ssub.s32 %s16, %s23
      %p25 = scmp.eq.s32.totalorder %s24, 0
      %s27 = sadd.s32 %s26, 1
      %s28 = scalar_select %p25, %s26, %s27
      %p31 = pneg %p25
      %p32 = scmp.eq.s32.totalorder %s16, 1
      %p33 = por %p31, %p32
      %p34 = scmp.ne.s32.totalorder %s26, %s29
      %p35 = scmp.eq.s32.totalorder %s16, 0
      %p36 = por %p34, %p35
      %p37 = scmp.ne.s32.totalorder %s26, %s29
      %p38 = scmp.eq.s32.totalorder %s21, 1
      %p39 = por %p37, %p38
      %p40 = scmp.ne.s32.totalorder %s29, %s30
      %p41 = scmp.eq.s32.totalorder %s21, 0
      %p42 = por %p40, %p41
      %p43 = scmp.ne.s32.totalorder %s29, %s30
      %p44 = scmp.eq.s32.totalorder %s22, 1
      %p45 = por %p43, %p44
      %p47 = scmp.ne.s32.totalorder %s30, %s46
      %p48 = scmp.eq.s32.totalorder %s22, 0
      %p49 = por %p47, %p48
      %s51 = sadd.s32 %s50, 1
      %p54 = scmp.eq.s32.totalorder %s16, 1
      %p55 = scmp.ne.s32.totalorder %s50, %s52
      %p56 = scmp.eq.s32.totalorder %s16, 0
      %p57 = por %p55, %p56
      %p58 = scmp.ne.s32.totalorder %s50, %s52
      %p59 = scmp.eq.s32.totalorder %s21, 1
      %p60 = por %p58, %p59
      %p61 = scmp.ne.s32.totalorder %s52, %s53
      %p62 = scmp.eq.s32.totalorder %s21, 0
      %p63 = por %p61, %p62
      %p64 = scmp.ne.s32.totalorder %s52, %s53
      %p65 = scmp.eq.s32.totalorder %s22, 1
      %p66 = por %p64, %p65
      %p68 = scmp.ne.s32.totalorder %s53, %s67
      %p69 = scmp.eq.s32.totalorder %s22, 0
      %p70 = por %p68, %p69
      %s71 = ssub.s32 %s16, %s23
      %p72 = scmp.eq.s32.totalorder %s71, 0
      %s74 = sadd.s32 %s73, 1
      %s75 = scalar_select %p72, %s73, %s74
      %p78 = pneg %p72
      %p79 = scmp.eq.s32.totalorder %s16, 1
      %p80 = por %p78, %p79
      %p81 = scmp.ne.s32.totalorder %s73, %s76
      %p82 = scmp.eq.s32.totalorder %s16, 0
      %p83 = por %p81, %p82
      %p84 = scmp.ne.s32.totalorder %s73, %s76
      %p85 = scmp.eq.s32.totalorder %s21, 1
      %p86 = por %p84, %p85
      %p87 = scmp.ne.s32.totalorder %s76, %s77
      %p88 = scmp.eq.s32.totalorder %s21, 0
      %p89 = por %p87, %p88
      %p90 = scmp.ne.s32.totalorder %s76, %s77
      %p91 = scmp.eq.s32.totalorder %s22, 1
      %p92 = por %p90, %p91
      %p94 = scmp.ne.s32.totalorder %s77, %s93
      %p95 = scmp.eq.s32.totalorder %s22, 0
      %p96 = por %p94, %p95
      %s97 = ssub.s32 %s16, %s23
      %p98 = scmp.eq.s32.totalorder %s97, 0
      %s100 = sadd.s32 %s99, 1
      %s101 = scalar_select %p98, %s99, %s100
      %p104 = pneg %p98
      %p105 = scmp.eq.s32.totalorder %s16, 1
      %p106 = por %p104, %p105
      %p107 = scmp.ne.s32.totalorder %s99, %s102
      %p108 = scmp.eq.s32.totalorder %s16, 0
      %p109 = por %p107, %p108
      %p110 = scmp.ne.s32.totalorder %s99, %s102
      %p111 = scmp.eq.s32.totalorder %s21, 1
      %p112 = por %p110, %p111
      %p113 = scmp.ne.s32.totalorder %s102, %s103
      %p114 = scmp.eq.s32.totalorder %s21, 0
      %p115 = por %p113, %p114
      %p116 = scmp.ne.s32.totalorder %s102, %s103
      %p117 = scmp.eq.s32.totalorder %s22, 1
      %p118 = por %p116, %p117
      %p120 = scmp.ne.s32.totalorder %s103, %s119
      %p121 = scmp.eq.s32.totalorder %s22, 0
      %p122 = por %p120, %p121
      %p123 = scmp.le.s32.totalorder 1, %s16
      %p124 = scmp.lt.s32.totalorder %s16, 3
      %p125 = pnand %p123, %p124
      %p126 = pneg %p125
      // Predicated region
      $region9: #{tpu_custom_call.1} parent=5 // pred_check
        _
      $region10: #{tpu_custom_call.1} parent=5 // pred_check_branch
        %128 = sbr.rel (%p125) target = $region12
      $region11: #{tpu_custom_call.1} parent=5 // pred_region
        %s129 = ssub.s32 %s16, 1
        // Predicated region
        $region13: #{tpu_custom_call.1} parent=11 // pred_check
          %p130 = pneg %p63
        $region14: #{tpu_custom_call.1} parent=11 // pred_check_branch
          %132 = sbr.rel (%p130) target = $region16
        $region15: #{tpu_custom_call.1} parent=11 // pred_region
          _
        $region16: #{tpu_custom_call.1} parent=11 // pred_fallthru
          _
      $region12: #{tpu_custom_call.1} parent=5 // pred_fallthru
        _
      %p133 = scmp.lt.s32.totalorder %s16, 2
      // Predicated region
      $region17: #{tpu_custom_call.1} parent=5 // pred_check
        %p134 = pneg %p133
      $region18: #{tpu_custom_call.1} parent=5 // pred_check_branch
        %136 = sbr.rel (%p134) target = $region20
      $region19: #{tpu_custom_call.1} parent=5 // pred_region
        // Predicated region
        $region21: #{tpu_custom_call.1} parent=19 // pred_check
          %p137 = pneg %p36
        $region22: #{tpu_custom_call.1} parent=19 // pred_check_branch
          %139 = sbr.rel (%p137) target = $region24
        $region23: #{tpu_custom_call.1} parent=19 // pred_region
          %p140 = scmp.lt.s32.totalorder %s16, 1
          %s141 = scalar_select %p140, %s16, 1
          %s142 = smul.addr %s141, 32
          %s143 = smul.addr %s142, 8
          %s144 = scalar_lea.vmem %s0, %s143
        $region24: #{tpu_custom_call.1} parent=19 // pred_fallthru
          _
      $region20: #{tpu_custom_call.1} parent=5 // pred_fallthru
        _
      %p145 = scmp.le.s32.totalorder 1, %s16
      %p146 = scmp.lt.s32.totalorder %s16, 3
      %p147 = pnand %p145, %p146
      %p148 = pneg %p147
      // Predicated region
      $region25: #{tpu_custom_call.1} parent=5 // pred_check
        _
      $region26: #{tpu_custom_call.1} parent=5 // pred_check_branch
        %150 = sbr.rel (%p147) target = $region28
      $region27: #{tpu_custom_call.1} parent=5 // pred_region
        %s151 = ssub.s32 %s16, 1
        %p152 = scmp.lt.s32.totalorder %s21, 1
        %s153 = scalar_select %p152, %s21, 1
        %s154 = smul.addr %s153, 32
        %s155 = smul.addr %s154, 8
        %s156 = scalar_lea.vmem %s0, %s155
        %p157 = pneg %p42
        %p158 = pneg %p39
        %p159 = pneg %p63
        %p160 = pneg %p60
        %p161 = pneg %p89
        %p162 = pneg %p86
        %s163 = sand.u32 %s76, 1
        %s164 = scalar_lea.sflag [#allocation3], %s163
        %s165 = sand.u32 %s76, 1
        %s166 = smul.addr %s165, 256
        %s167 = scalar_lea.vmem [#allocation2], %s166
        %p168 = pneg %p115
        %p169 = pneg %p112
        %s170 = sand.u32 %s102, 1
        %s171 = scalar_lea.sflag [#allocation5], %s170
        %s172 = sand.u32 %s102, 1
        %s173 = smul.addr %s172, 2
        %s174 = scalar_lea.vmem [#allocation4], %s173
        %p175 = scmp.lt.s32.totalorder %s21, 1
        %s176 = scalar_select %p175, %s21, 1
        %s177 = smul.addr %s176, 32
        %s178 = smul.addr %s177, 8
        %s179 = scalar_lea.vmem %s0, %s178
        %v181 = vld [vmem:[%s179] sm:$0xff]
        %v182 = vld [vmem:[%s179 + $0x8] sm:$0xff]
        %v183 = vld [vmem:[%s179 + $0x10] sm:$0xff]
        %v184 = vld [vmem:[%s179 + $0x18] sm:$0xff]
        %v185 = vld [vmem:[%s179 + $0x20] sm:$0xff]
        %v186 = vld [vmem:[%s179 + $0x28] sm:$0xff]
        %v187 = vld [vmem:[%s179 + $0x30] sm:$0xff]
        %v188 = vld [vmem:[%s179 + $0x38] sm:$0xff]
        %v189 = vld [vmem:[%s179 + $0x40] sm:$0xff]
        %v190 = vld [vmem:[%s179 + $0x48] sm:$0xff]
        %v191 = vld [vmem:[%s179 + $0x50] sm:$0xff]
        %v192 = vld [vmem:[%s179 + $0x58] sm:$0xff]
        %v193 = vld [vmem:[%s179 + $0x60] sm:$0xff]
        %v194 = vld [vmem:[%s179 + $0x68] sm:$0xff]
        %v195 = vld [vmem:[%s179 + $0x70] sm:$0xff]
        %v196 = vld [vmem:[%s179 + $0x78] sm:$0xff]
        %v197 = vld [vmem:[%s179 + $0x80] sm:$0xff]
        %v198 = vld [vmem:[%s179 + $0x88] sm:$0xff]
        %v199 = vld [vmem:[%s179 + $0x90] sm:$0xff]
        %v200 = vld [vmem:[%s179 + $0x98] sm:$0xff]
        %v201 = vld [vmem:[%s179 + $0xa0] sm:$0xff]
        %v202 = vld [vmem:[%s179 + $0xa8] sm:$0xff]
        %v203 = vld [vmem:[%s179 + $0xb0] sm:$0xff]
        %v204 = vld [vmem:[%s179 + $0xb8] sm:$0xff]
        %v205 = vld [vmem:[%s179 + $0xc0] sm:$0xff]
        %v206 = vld [vmem:[%s179 + $0xc8] sm:$0xff]
        %v207 = vld [vmem:[%s179 + $0xd0] sm:$0xff]
        %v208 = vld [vmem:[%s179 + $0xd8] sm:$0xff]
        %v209 = vld [vmem:[%s179 + $0xe0] sm:$0xff]
        %v210 = vld [vmem:[%s179 + $0xe8] sm:$0xff]
        %v211 = vld [vmem:[%s179 + $0xf0] sm:$0xff]
        %v212 = vld [vmem:[%s179 + $0xf8] sm:$0xff]
        %vm246 = vcmask 1040384
        %v247 = vrot.slane 0.0, 7
        %v248 = vsel %vm246, %v247, %v247
        %v249 = vrot.slane %v181, 7
        %v250 = vrot.slane %v182, 7
        %v251 = vsel %vm246, %v249, %v250
        %v252 = vrot.slane %v183, 7
        %v253 = vrot.slane %v184, 7
        %v254 = vsel %vm246, %v252, %v253
        %v255 = vrot.slane %v185, 7
        %v256 = vrot.slane %v186, 7
        %v257 = vsel %vm246, %v255, %v256
        %v258 = vrot.slane %v187, 7
        %v259 = vrot.slane %v188, 7
        %v260 = vsel %vm246, %v258, %v259
        %v261 = vrot.slane %v189, 7
        %v262 = vrot.slane %v190, 7
        %v263 = vsel %vm246, %v261, %v262
        %v264 = vrot.slane %v191, 7
        %v265 = vrot.slane %v192, 7
        %v266 = vsel %vm246, %v264, %v265
        %v267 = vrot.slane %v193, 7
        %v268 = vrot.slane %v194, 7
        %v269 = vsel %vm246, %v267, %v268
        %v270 = vrot.slane %v195, 7
        %v271 = vrot.slane %v196, 7
        %v272 = vsel %vm246, %v270, %v271
        %v273 = vrot.slane %v197, 7
        %v274 = vrot.slane %v198, 7
        %v275 = vsel %vm246, %v273, %v274
        %v276 = vrot.slane %v199, 7
        %v277 = vrot.slane %v200, 7
        %v278 = vsel %vm246, %v276, %v277
        %v279 = vrot.slane %v201, 7
        %v280 = vrot.slane %v202, 7
        %v281 = vsel %vm246, %v279, %v280
        %v282 = vrot.slane %v203, 7
        %v283 = vrot.slane %v204, 7
        %v284 = vsel %vm246, %v282, %v283
        %v285 = vrot.slane %v205, 7
        %v286 = vrot.slane %v206, 7
        %v287 = vsel %vm246, %v285, %v286
        %v288 = vrot.slane %v207, 7
        %v289 = vrot.slane %v208, 7
        %v290 = vsel %vm246, %v288, %v289
        %v291 = vrot.slane %v209, 7
        %v292 = vrot.slane %v210, 7
        %v293 = vsel %vm246, %v291, %v292
        %v294 = vrot.slane %v211, 7
        %v295 = vrot.slane %v212, 7
        %v296 = vsel %vm246, %v294, %v295
        %v346 = vsel %vm246, 0.0, %v247
        %v347 = vsel %vm246, 0.0, %v249
        %v348 = vsel %vm246, 0.0, %v252
        %v349 = vsel %vm246, 0.0, %v255
        %v350 = vsel %vm246, 0.0, %v258
        %v351 = vsel %vm246, 0.0, %v261
        %v352 = vsel %vm246, 0.0, %v264
        %v353 = vsel %vm246, 0.0, %v267
        %v354 = vsel %vm246, 0.0, %v270
        %v355 = vsel %vm246, 0.0, %v273
        %v356 = vsel %vm246, 0.0, %v276
        %v357 = vsel %vm246, 0.0, %v279
        %v358 = vsel %vm246, 0.0, %v282
        %v359 = vsel %vm246, 0.0, %v285
        %v360 = vsel %vm246, 0.0, %v288
        %v361 = vsel %vm246, 0.0, %v291
        %v362 = vsel %vm246, 0.0, %v294
        %v363 = vsel %vm246, %v247, 0.0
        %v364 = vsel %vm246, %v250, 0.0
        %v365 = vsel %vm246, %v253, 0.0
        %v366 = vsel %vm246, %v256, 0.0
        %v367 = vsel %vm246, %v259, 0.0
        %v368 = vsel %vm246, %v262, 0.0
        %v369 = vsel %vm246, %v265, 0.0
        %v370 = vsel %vm246, %v268, 0.0
        %v371 = vsel %vm246, %v271, 0.0
        %v372 = vsel %vm246, %v274, 0.0
        %v373 = vsel %vm246, %v277, 0.0
        %v374 = vsel %vm246, %v280, 0.0
        %v375 = vsel %vm246, %v283, 0.0
        %v376 = vsel %vm246, %v286, 0.0
        %v377 = vsel %vm246, %v289, 0.0
        %v378 = vsel %vm246, %v292, 0.0
        %v379 = vsel %vm246, %v295, 0.0
        %vm412 = vcmask 1046528
        %v413 = vrot.slane %v346, 1
        %v414 = vrot.slane %v248, 1
        %v415 = vsel %vm412, %v413, %v414
        %v416 = vrot.slane %v363, 1
        %v417 = vsel %vm412, %v414, %v416
        %v418 = vrot.slane %v347, 1
        %v419 = vrot.slane %v251, 1
        %v420 = vsel %vm412, %v418, %v419
        %v421 = vrot.slane %v364, 1
        %v422 = vsel %vm412, %v419, %v421
        %v423 = vrot.slane %v348, 1
        %v424 = vrot.slane %v254, 1
        %v425 = vsel %vm412, %v423, %v424
        %v426 = vrot.slane %v365, 1
        %v427 = vsel %vm412, %v424, %v426
        %v428 = vrot.slane %v349, 1
        %v429 = vrot.slane %v257, 1
        %v430 = vsel %vm412, %v428, %v429
        %v431 = vrot.slane %v366, 1
        %v432 = vsel %vm412, %v429, %v431
        %v433 = vrot.slane %v350, 1
        %v434 = vrot.slane %v260, 1
        %v435 = vsel %vm412, %v433, %v434
        %v436 = vrot.slane %v367, 1
        %v437 = vsel %vm412, %v434, %v436
        %v438 = vrot.slane %v351, 1
        %v439 = vrot.slane %v263, 1
        %v440 = vsel %vm412, %v438, %v439
        %v441 = vrot.slane %v368, 1
        %v442 = vsel %vm412, %v439, %v441
        %v443 = vrot.slane %v352, 1
        %v444 = vrot.slane %v266, 1
        %v445 = vsel %vm412, %v443, %v444
        %v446 = vrot.slane %v369, 1
        %v447 = vsel %vm412, %v444, %v446
        %v448 = vrot.slane %v353, 1
        %v449 = vrot.slane %v269, 1
        %v450 = vsel %vm412, %v448, %v449
        %v451 = vrot.slane %v370, 1
        %v452 = vsel %vm412, %v449, %v451
        %v453 = vrot.slane %v354, 1
        %v454 = vrot.slane %v272, 1
        %v455 = vsel %vm412, %v453, %v454
        %v456 = vrot.slane %v371, 1
        %v457 = vsel %vm412, %v454, %v456
        %v458 = vrot.slane %v355, 1
        %v459 = vrot.slane %v275, 1
        %v460 = vsel %vm412, %v458, %v459
        %v461 = vrot.slane %v372, 1
        %v462 = vsel %vm412, %v459, %v461
        %v463 = vrot.slane %v356, 1
        %v464 = vrot.slane %v278, 1
        %v465 = vsel %vm412, %v463, %v464
        %v466 = vrot.slane %v373, 1
        %v467 = vsel %vm412, %v464, %v466
        %v468 = vrot.slane %v357, 1
        %v469 = vrot.slane %v281, 1
        %v470 = vsel %vm412, %v468, %v469
        %v471 = vrot.slane %v374, 1
        %v472 = vsel %vm412, %v469, %v471
        %v473 = vrot.slane %v358, 1
        %v474 = vrot.slane %v284, 1
        %v475 = vsel %vm412, %v473, %v474
        %v476 = vrot.slane %v375, 1
        %v477 = vsel %vm412, %v474, %v476
        %v478 = vrot.slane %v359, 1
        %v479 = vrot.slane %v287, 1
        %v480 = vsel %vm412, %v478, %v479
        %v481 = vrot.slane %v376, 1
        %v482 = vsel %vm412, %v479, %v481
        %v483 = vrot.slane %v360, 1
        %v484 = vrot.slane %v290, 1
        %v485 = vsel %vm412, %v483, %v484
        %v486 = vrot.slane %v377, 1
        %v487 = vsel %vm412, %v484, %v486
        %v488 = vrot.slane %v361, 1
        %v489 = vrot.slane %v293, 1
        %v490 = vsel %vm412, %v488, %v489
        %v491 = vrot.slane %v378, 1
        %v492 = vsel %vm412, %v489, %v491
        %vm493 = vcmask 1045504
        %v494 = vrot.slane %v346, 2
        %v495 = vrot.slane %v248, 2
        %v496 = vsel %vm493, %v494, %v495
        %v497 = vrot.slane %v363, 2
        %v498 = vsel %vm493, %v495, %v497
        %v499 = vrot.slane %v347, 2
        %v500 = vrot.slane %v251, 2
        %v501 = vsel %vm493, %v499, %v500
        %v502 = vrot.slane %v364, 2
        %v503 = vsel %vm493, %v500, %v502
        %v504 = vrot.slane %v348, 2
        %v505 = vrot.slane %v254, 2
        %v506 = vsel %vm493, %v504, %v505
        %v507 = vrot.slane %v365, 2
        %v508 = vsel %vm493, %v505, %v507
        %v509 = vrot.slane %v349, 2
        %v510 = vrot.slane %v257, 2
        %v511 = vsel %vm493, %v509, %v510
        %v512 = vrot.slane %v366, 2
        %v513 = vsel %vm493, %v510, %v512
        %v514 = vrot.slane %v350, 2
        %v515 = vrot.slane %v260, 2
        %v516 = vsel %vm493, %v514, %v515
        %v517 = vrot.slane %v367, 2
        %v518 = vsel %vm493, %v515, %v517
        %v519 = vrot.slane %v351, 2
        %v520 = vrot.slane %v263, 2
        %v521 = vsel %vm493, %v519, %v520
        %v522 = vrot.slane %v368, 2
        %v523 = vsel %vm493, %v520, %v522
        %v524 = vrot.slane %v352, 2
        %v525 = vrot.slane %v266, 2
        %v526 = vsel %vm493, %v524, %v525
        %v527 = vrot.slane %v369, 2
        %v528 = vsel %vm493, %v525, %v527
        %v529 = vrot.slane %v353, 2
        %v530 = vrot.slane %v269, 2
        %v531 = vsel %vm493, %v529, %v530
        %v532 = vrot.slane %v370, 2
        %v533 = vsel %vm493, %v530, %v532
        %v534 = vrot.slane %v354, 2
        %v535 = vrot.slane %v272, 2
        %v536 = vsel %vm493, %v534, %v535
        %v537 = vrot.slane %v371, 2
        %v538 = vsel %vm493, %v535, %v537
        %v539 = vrot.slane %v355, 2
        %v540 = vrot.slane %v275, 2
        %v541 = vsel %vm493, %v539, %v540
        %v542 = vrot.slane %v372, 2
        %v543 = vsel %vm493, %v540, %v542
        %v544 = vrot.slane %v356, 2
        %v545 = vrot.slane %v278, 2
        %v546 = vsel %vm493, %v544, %v545
        %v547 = vrot.slane %v373, 2
        %v548 = vsel %vm493, %v545, %v547
        %v549 = vrot.slane %v357, 2
        %v550 = vrot.slane %v281, 2
        %v551 = vsel %vm493, %v549, %v550
        %v552 = vrot.slane %v374, 2
        %v553 = vsel %vm493, %v550, %v552
        %v554 = vrot.slane %v358, 2
        %v555 = vrot.slane %v284, 2
        %v556 = vsel %vm493, %v554, %v555
        %v557 = vrot.slane %v375, 2
        %v558 = vsel %vm493, %v555, %v557
        %v559 = vrot.slane %v359, 2
        %v560 = vrot.slane %v287, 2
        %v561 = vsel %vm493, %v559, %v560
        %v562 = vrot.slane %v376, 2
        %v563 = vsel %vm493, %v560, %v562
        %v564 = vrot.slane %v360, 2
        %v565 = vrot.slane %v290, 2
        %v566 = vsel %vm493, %v564, %v565
        %v567 = vrot.slane %v377, 2
        %v568 = vsel %vm493, %v565, %v567
        %v569 = vrot.slane %v361, 2
        %v570 = vrot.slane %v293, 2
        %v571 = vsel %vm493, %v569, %v570
        %v572 = vrot.slane %v378, 2
        %v573 = vsel %vm493, %v570, %v572
        %v576 = vrot.slane %v362, 1
        %v577 = vrot.slane %v296, 1
        %v578 = vsel %vm412, %v576, %v577
        %v579 = vrot.slane %v379, 1
        %v580 = vsel %vm412, %v577, %v579
        %v581 = vrot.slane %v362, 2
        %v582 = vrot.slane %v296, 2
        %v583 = vsel %vm493, %v581, %v582
        %v584 = vrot.slane %v379, 2
        %v585 = vsel %vm493, %v582, %v584
        %586 = vrot.lane.b32.xlu0 %v415, 4
        %v587 = vpop.permute.xlu0 %586
        %588 = vrot.lane.b32.xlu0 %v417, 4
        %v589 = vpop.permute.xlu0 %588
        %590 = vrot.lane.b32.xlu0 %v420, 4
        %v591 = vpop.permute.xlu0 %590
        %592 = vrot.lane.b32.xlu0 %v422, 4
        %v593 = vpop.permute.xlu0 %592
        %594 = vrot.lane.b32.xlu0 %v425, 4
        %v595 = vpop.permute.xlu0 %594
        %596 = vrot.lane.b32.xlu0 %v427, 4
        %v597 = vpop.permute.xlu0 %596
        %598 = vrot.lane.b32.xlu0 %v430, 4
        %v599 = vpop.permute.xlu0 %598
        %600 = vrot.lane.b32.xlu0 %v432, 4
        %v601 = vpop.permute.xlu0 %600
        %602 = vrot.lane.b32.xlu0 %v435, 4
        %v603 = vpop.permute.xlu0 %602
        %604 = vrot.lane.b32.xlu0 %v437, 4
        %v605 = vpop.permute.xlu0 %604
        %606 = vrot.lane.b32.xlu0 %v440, 4
        %v607 = vpop.permute.xlu0 %606
        %608 = vrot.lane.b32.xlu0 %v442, 4
        %v609 = vpop.permute.xlu0 %608
        %610 = vrot.lane.b32.xlu0 %v445, 4
        %v611 = vpop.permute.xlu0 %610
        %612 = vrot.lane.b32.xlu0 %v447, 4
        %v613 = vpop.permute.xlu0 %612
        %614 = vrot.lane.b32.xlu0 %v450, 4
        %v615 = vpop.permute.xlu0 %614
        %616 = vrot.lane.b32.xlu0 %v452, 4
        %v617 = vpop.permute.xlu0 %616
        %618 = vrot.lane.b32.xlu0 %v455, 4
        %v619 = vpop.permute.xlu0 %618
        %620 = vrot.lane.b32.xlu0 %v457, 4
        %v621 = vpop.permute.xlu0 %620
        %622 = vrot.lane.b32.xlu0 %v460, 4
        %v623 = vpop.permute.xlu0 %622
        %624 = vrot.lane.b32.xlu0 %v462, 4
        %v625 = vpop.permute.xlu0 %624
        %626 = vrot.lane.b32.xlu0 %v465, 4
        %v627 = vpop.permute.xlu0 %626
        %628 = vrot.lane.b32.xlu0 %v467, 4
        %v629 = vpop.permute.xlu0 %628
        %630 = vrot.lane.b32.xlu0 %v470, 4
        %v631 = vpop.permute.xlu0 %630
        %632 = vrot.lane.b32.xlu0 %v472, 4
        %v633 = vpop.permute.xlu0 %632
        %634 = vrot.lane.b32.xlu0 %v475, 4
        %v635 = vpop.permute.xlu0 %634
        %636 = vrot.lane.b32.xlu0 %v477, 4
        %v637 = vpop.permute.xlu0 %636
        %638 = vrot.lane.b32.xlu0 %v480, 4
        %v639 = vpop.permute.xlu0 %638
        %640 = vrot.lane.b32.xlu0 %v482, 4
        %v641 = vpop.permute.xlu0 %640
        %642 = vrot.lane.b32.xlu0 %v485, 4
        %v643 = vpop.permute.xlu0 %642
        %644 = vrot.lane.b32.xlu0 %v487, 4
        %v645 = vpop.permute.xlu0 %644
        %646 = vrot.lane.b32.xlu0 %v490, 4
        %v647 = vpop.permute.xlu0 %646
        %648 = vrot.lane.b32.xlu0 %v492, 4
        %v649 = vpop.permute.xlu0 %648
        %682 = vrot.lane.b32.xlu0 %v496, 8
        %v683 = vpop.permute.xlu0 %682
        %684 = vrot.lane.b32.xlu0 %v498, 8
        %v685 = vpop.permute.xlu0 %684
        %686 = vrot.lane.b32.xlu0 %v501, 8
        %v687 = vpop.permute.xlu0 %686
        %688 = vrot.lane.b32.xlu0 %v503, 8
        %v689 = vpop.permute.xlu0 %688
        %690 = vrot.lane.b32.xlu0 %v506, 8
        %v691 = vpop.permute.xlu0 %690
        %692 = vrot.lane.b32.xlu0 %v508, 8
        %v693 = vpop.permute.xlu0 %692
        %694 = vrot.lane.b32.xlu0 %v511, 8
        %v695 = vpop.permute.xlu0 %694
        %696 = vrot.lane.b32.xlu0 %v513, 8
        %v697 = vpop.permute.xlu0 %696
        %698 = vrot.lane.b32.xlu0 %v516, 8
        %v699 = vpop.permute.xlu0 %698
        %700 = vrot.lane.b32.xlu0 %v518, 8
        %v701 = vpop.permute.xlu0 %700
        %702 = vrot.lane.b32.xlu0 %v521, 8
        %v703 = vpop.permute.xlu0 %702
        %704 = vrot.lane.b32.xlu0 %v523, 8
        %v705 = vpop.permute.xlu0 %704
        %706 = vrot.lane.b32.xlu0 %v526, 8
        %v707 = vpop.permute.xlu0 %706
        %708 = vrot.lane.b32.xlu0 %v528, 8
        %v709 = vpop.permute.xlu0 %708
        %710 = vrot.lane.b32.xlu0 %v531, 8
        %v711 = vpop.permute.xlu0 %710
        %712 = vrot.lane.b32.xlu0 %v533, 8
        %v713 = vpop.permute.xlu0 %712
        %714 = vrot.lane.b32.xlu0 %v536, 8
        %v715 = vpop.permute.xlu0 %714
        %716 = vrot.lane.b32.xlu0 %v538, 8
        %v717 = vpop.permute.xlu0 %716
        %718 = vrot.lane.b32.xlu0 %v541, 8
        %v719 = vpop.permute.xlu0 %718
        %720 = vrot.lane.b32.xlu0 %v543, 8
        %v721 = vpop.permute.xlu0 %720
        %722 = vrot.lane.b32.xlu0 %v546, 8
        %v723 = vpop.permute.xlu0 %722
        %724 = vrot.lane.b32.xlu0 %v548, 8
        %v725 = vpop.permute.xlu0 %724
        %726 = vrot.lane.b32.xlu0 %v551, 8
        %v727 = vpop.permute.xlu0 %726
        %728 = vrot.lane.b32.xlu0 %v553, 8
        %v729 = vpop.permute.xlu0 %728
        %730 = vrot.lane.b32.xlu0 %v556, 8
        %v731 = vpop.permute.xlu0 %730
        %732 = vrot.lane.b32.xlu0 %v558, 8
        %v733 = vpop.permute.xlu0 %732
        %734 = vrot.lane.b32.xlu0 %v561, 8
        %v735 = vpop.permute.xlu0 %734
        %736 = vrot.lane.b32.xlu0 %v563, 8
        %v737 = vpop.permute.xlu0 %736
        %738 = vrot.lane.b32.xlu0 %v566, 8
        %v739 = vpop.permute.xlu0 %738
        %740 = vrot.lane.b32.xlu0 %v568, 8
        %v741 = vpop.permute.xlu0 %740
        %742 = vrot.lane.b32.xlu0 %v571, 8
        %v743 = vpop.permute.xlu0 %742
        %744 = vrot.lane.b32.xlu0 %v573, 8
        %v745 = vpop.permute.xlu0 %744
        %778 = vrot.lane.b32.xlu0 %v347, 12
        %v779 = vpop.permute.xlu0 %778
        %780 = vrot.lane.b32.xlu0 %v251, 12
        %v781 = vpop.permute.xlu0 %780
        %782 = vrot.lane.b32.xlu0 %v348, 12
        %v783 = vpop.permute.xlu0 %782
        %784 = vrot.lane.b32.xlu0 %v254, 12
        %v785 = vpop.permute.xlu0 %784
        %786 = vrot.lane.b32.xlu0 %v349, 12
        %v787 = vpop.permute.xlu0 %786
        %788 = vrot.lane.b32.xlu0 %v257, 12
        %v789 = vpop.permute.xlu0 %788
        %790 = vrot.lane.b32.xlu0 %v350, 12
        %v791 = vpop.permute.xlu0 %790
        %792 = vrot.lane.b32.xlu0 %v260, 12
        %v793 = vpop.permute.xlu0 %792
        %794 = vrot.lane.b32.xlu0 %v351, 12
        %v795 = vpop.permute.xlu0 %794
        %796 = vrot.lane.b32.xlu0 %v263, 12
        %v797 = vpop.permute.xlu0 %796
        %798 = vrot.lane.b32.xlu0 %v352, 12
        %v799 = vpop.permute.xlu0 %798
        %800 = vrot.lane.b32.xlu0 %v266, 12
        %v801 = vpop.permute.xlu0 %800
        %802 = vrot.lane.b32.xlu0 %v353, 12
        %v803 = vpop.permute.xlu0 %802
        %804 = vrot.lane.b32.xlu0 %v269, 12
        %v805 = vpop.permute.xlu0 %804
        %806 = vrot.lane.b32.xlu0 %v354, 12
        %v807 = vpop.permute.xlu0 %806
        %808 = vrot.lane.b32.xlu0 %v272, 12
        %v809 = vpop.permute.xlu0 %808
        %810 = vrot.lane.b32.xlu0 %v355, 12
        %v811 = vpop.permute.xlu0 %810
        %812 = vrot.lane.b32.xlu0 %v275, 12
        %v813 = vpop.permute.xlu0 %812
        %814 = vrot.lane.b32.xlu0 %v356, 12
        %v815 = vpop.permute.xlu0 %814
        %816 = vrot.lane.b32.xlu0 %v278, 12
        %v817 = vpop.permute.xlu0 %816
        %818 = vrot.lane.b32.xlu0 %v357, 12
        %v819 = vpop.permute.xlu0 %818
        %820 = vrot.lane.b32.xlu0 %v281, 12
        %v821 = vpop.permute.xlu0 %820
        %822 = vrot.lane.b32.xlu0 %v358, 12
        %v823 = vpop.permute.xlu0 %822
        %824 = vrot.lane.b32.xlu0 %v284, 12
        %v825 = vpop.permute.xlu0 %824
        %826 = vrot.lane.b32.xlu0 %v359, 12
        %v827 = vpop.permute.xlu0 %826
        %828 = vrot.lane.b32.xlu0 %v287, 12
        %v829 = vpop.permute.xlu0 %828
        %830 = vrot.lane.b32.xlu0 %v360, 12
        %v831 = vpop.permute.xlu0 %830
        %832 = vrot.lane.b32.xlu0 %v290, 12
        %v833 = vpop.permute.xlu0 %832
        %834 = vrot.lane.b32.xlu0 %v361, 12
        %v835 = vpop.permute.xlu0 %834
        %836 = vrot.lane.b32.xlu0 %v293, 12
        %v837 = vpop.permute.xlu0 %836
        %838 = vrot.lane.b32.xlu0 %v362, 12
        %v839 = vpop.permute.xlu0 %838
        %840 = vrot.lane.b32.xlu0 %v296, 12
        %v841 = vpop.permute.xlu0 %840
        %874 = vrot.lane.b32.xlu0 %v420, 16
        %v875 = vpop.permute.xlu0 %874
        %876 = vrot.lane.b32.xlu0 %v422, 16
        %v877 = vpop.permute.xlu0 %876
        %878 = vrot.lane.b32.xlu0 %v425, 16
        %v879 = vpop.permute.xlu0 %878
        %880 = vrot.lane.b32.xlu0 %v427, 16
        %v881 = vpop.permute.xlu0 %880
        %882 = vrot.lane.b32.xlu0 %v430, 16
        %v883 = vpop.permute.xlu0 %882
        %884 = vrot.lane.b32.xlu0 %v432, 16
        %v885 = vpop.permute.xlu0 %884
        %886 = vrot.lane.b32.xlu0 %v435, 16
        %v887 = vpop.permute.xlu0 %886
        %888 = vrot.lane.b32.xlu0 %v437, 16
        %v889 = vpop.permute.xlu0 %888
        %890 = vrot.lane.b32.xlu0 %v440, 16
        %v891 = vpop.permute.xlu0 %890
        %892 = vrot.lane.b32.xlu0 %v442, 16
        %v893 = vpop.permute.xlu0 %892
        %894 = vrot.lane.b32.xlu0 %v445, 16
        %v895 = vpop.permute.xlu0 %894
        %896 = vrot.lane.b32.xlu0 %v447, 16
        %v897 = vpop.permute.xlu0 %896
        %898 = vrot.lane.b32.xlu0 %v450, 16
        %v899 = vpop.permute.xlu0 %898
        %900 = vrot.lane.b32.xlu0 %v452, 16
        %v901 = vpop.permute.xlu0 %900
        %902 = vrot.lane.b32.xlu0 %v455, 16
        %v903 = vpop.permute.xlu0 %902
        %904 = vrot.lane.b32.xlu0 %v457, 16
        %v905 = vpop.permute.xlu0 %904
        %906 = vrot.lane.b32.xlu0 %v460, 16
        %v907 = vpop.permute.xlu0 %906
        %908 = vrot.lane.b32.xlu0 %v462, 16
        %v909 = vpop.permute.xlu0 %908
        %910 = vrot.lane.b32.xlu0 %v465, 16
        %v911 = vpop.permute.xlu0 %910
        %912 = vrot.lane.b32.xlu0 %v467, 16
        %v913 = vpop.permute.xlu0 %912
        %914 = vrot.lane.b32.xlu0 %v470, 16
        %v915 = vpop.permute.xlu0 %914
        %916 = vrot.lane.b32.xlu0 %v472, 16
        %v917 = vpop.permute.xlu0 %916
        %918 = vrot.lane.b32.xlu0 %v475, 16
        %v919 = vpop.permute.xlu0 %918
        %920 = vrot.lane.b32.xlu0 %v477, 16
        %v921 = vpop.permute.xlu0 %920
        %922 = vrot.lane.b32.xlu0 %v480, 16
        %v923 = vpop.permute.xlu0 %922
        %924 = vrot.lane.b32.xlu0 %v482, 16
        %v925 = vpop.permute.xlu0 %924
        %926 = vrot.lane.b32.xlu0 %v485, 16
        %v927 = vpop.permute.xlu0 %926
        %928 = vrot.lane.b32.xlu0 %v487, 16
        %v929 = vpop.permute.xlu0 %928
        %930 = vrot.lane.b32.xlu0 %v490, 16
        %v931 = vpop.permute.xlu0 %930
        %932 = vrot.lane.b32.xlu0 %v492, 16
        %v933 = vpop.permute.xlu0 %932
        %934 = vrot.lane.b32.xlu0 %v578, 16
        %v935 = vpop.permute.xlu0 %934
        %936 = vrot.lane.b32.xlu0 %v580, 16
        %v937 = vpop.permute.xlu0 %936
        %970 = vrot.lane.b32.xlu0 %v501, 20
        %v971 = vpop.permute.xlu0 %970
        %972 = vrot.lane.b32.xlu0 %v503, 20
        %v973 = vpop.permute.xlu0 %972
        %974 = vrot.lane.b32.xlu0 %v506, 20
        %v975 = vpop.permute.xlu0 %974
        %976 = vrot.lane.b32.xlu0 %v508, 20
        %v977 = vpop.permute.xlu0 %976
        %978 = vrot.lane.b32.xlu0 %v511, 20
        %v979 = vpop.permute.xlu0 %978
        %980 = vrot.lane.b32.xlu0 %v513, 20
        %v981 = vpop.permute.xlu0 %980
        %982 = vrot.lane.b32.xlu0 %v516, 20
        %v983 = vpop.permute.xlu0 %982
        %984 = vrot.lane.b32.xlu0 %v518, 20
        %v985 = vpop.permute.xlu0 %984
        %986 = vrot.lane.b32.xlu0 %v521, 20
        %v987 = vpop.permute.xlu0 %986
        %988 = vrot.lane.b32.xlu0 %v523, 20
        %v989 = vpop.permute.xlu0 %988
        %990 = vrot.lane.b32.xlu0 %v526, 20
        %v991 = vpop.permute.xlu0 %990
        %992 = vrot.lane.b32.xlu0 %v528, 20
        %v993 = vpop.permute.xlu0 %992
        %994 = vrot.lane.b32.xlu0 %v531, 20
        %v995 = vpop.permute.xlu0 %994
        %996 = vrot.lane.b32.xlu0 %v533, 20
        %v997 = vpop.permute.xlu0 %996
        %998 = vrot.lane.b32.xlu0 %v536, 20
        %v999 = vpop.permute.xlu0 %998
        %1000 = vrot.lane.b32.xlu0 %v538, 20
        %v1001 = vpop.permute.xlu0 %1000
        %1002 = vrot.lane.b32.xlu0 %v541, 20
        %v1003 = vpop.permute.xlu0 %1002
        %1004 = vrot.lane.b32.xlu0 %v543, 20
        %v1005 = vpop.permute.xlu0 %1004
        %1006 = vrot.lane.b32.xlu0 %v546, 20
        %v1007 = vpop.permute.xlu0 %1006
        %1008 = vrot.lane.b32.xlu0 %v548, 20
        %v1009 = vpop.permute.xlu0 %1008
        %1010 = vrot.lane.b32.xlu0 %v551, 20
        %v1011 = vpop.permute.xlu0 %1010
        %1012 = vrot.lane.b32.xlu0 %v553, 20
        %v1013 = vpop.permute.xlu0 %1012
        %1014 = vrot.lane.b32.xlu0 %v556, 20
        %v1015 = vpop.permute.xlu0 %1014
        %1016 = vrot.lane.b32.xlu0 %v558, 20
        %v1017 = vpop.permute.xlu0 %1016
        %1018 = vrot.lane.b32.xlu0 %v561, 20
        %v1019 = vpop.permute.xlu0 %1018
        %1020 = vrot.lane.b32.xlu0 %v563, 20
        %v1021 = vpop.permute.xlu0 %1020
        %1022 = vrot.lane.b32.xlu0 %v566, 20
        %v1023 = vpop.permute.xlu0 %1022
        %1024 = vrot.lane.b32.xlu0 %v568, 20
        %v1025 = vpop.permute.xlu0 %1024
        %1026 = vrot.lane.b32.xlu0 %v571, 20
        %v1027 = vpop.permute.xlu0 %1026
        %1028 = vrot.lane.b32.xlu0 %v573, 20
        %v1029 = vpop.permute.xlu0 %1028
        %1030 = vrot.lane.b32.xlu0 %v583, 20
        %v1031 = vpop.permute.xlu0 %1030
        %1032 = vrot.lane.b32.xlu0 %v585, 20
        %v1033 = vpop.permute.xlu0 %1032
        %1066 = vrot.lane.b32.xlu0 %v348, 24
        %v1067 = vpop.permute.xlu0 %1066
        %1068 = vrot.lane.b32.xlu0 %v254, 24
        %v1069 = vpop.permute.xlu0 %1068
        %1070 = vrot.lane.b32.xlu0 %v349, 24
        %v1071 = vpop.permute.xlu0 %1070
        %1072 = vrot.lane.b32.xlu0 %v257, 24
        %v1073 = vpop.permute.xlu0 %1072
        %1074 = vrot.lane.b32.xlu0 %v350, 24
        %v1075 = vpop.permute.xlu0 %1074
        %1076 = vrot.lane.b32.xlu0 %v260, 24
        %v1077 = vpop.permute.xlu0 %1076
        %1078 = vrot.lane.b32.xlu0 %v351, 24
        %v1079 = vpop.permute.xlu0 %1078
        %1080 = vrot.lane.b32.xlu0 %v263, 24
        %v1081 = vpop.permute.xlu0 %1080
        %1082 = vrot.lane.b32.xlu0 %v352, 24
        %v1083 = vpop.permute.xlu0 %1082
        %1084 = vrot.lane.b32.xlu0 %v266, 24
        %v1085 = vpop.permute.xlu0 %1084
        %1086 = vrot.lane.b32.xlu0 %v353, 24
        %v1087 = vpop.permute.xlu0 %1086
        %1088 = vrot.lane.b32.xlu0 %v269, 24
        %v1089 = vpop.permute.xlu0 %1088
        %1090 = vrot.lane.b32.xlu0 %v354, 24
        %v1091 = vpop.permute.xlu0 %1090
        %1092 = vrot.lane.b32.xlu0 %v272, 24
        %v1093 = vpop.permute.xlu0 %1092
        %1094 = vrot.lane.b32.xlu0 %v355, 24
        %v1095 = vpop.permute.xlu0 %1094
        %1096 = vrot.lane.b32.xlu0 %v275, 24
        %v1097 = vpop.permute.xlu0 %1096
        %1098 = vrot.lane.b32.xlu0 %v356, 24
        %v1099 = vpop.permute.xlu0 %1098
        %1100 = vrot.lane.b32.xlu0 %v278, 24
        %v1101 = vpop.permute.xlu0 %1100
        %1102 = vrot.lane.b32.xlu0 %v357, 24
        %v1103 = vpop.permute.xlu0 %1102
        %1104 = vrot.lane.b32.xlu0 %v281, 24
        %v1105 = vpop.permute.xlu0 %1104
        %1106 = vrot.lane.b32.xlu0 %v358, 24
        %v1107 = vpop.permute.xlu0 %1106
        %1108 = vrot.lane.b32.xlu0 %v284, 24
        %v1109 = vpop.permute.xlu0 %1108
        %1110 = vrot.lane.b32.xlu0 %v359, 24
        %v1111 = vpop.permute.xlu0 %1110
        %1112 = vrot.lane.b32.xlu0 %v287, 24
        %v1113 = vpop.permute.xlu0 %1112
        %1114 = vrot.lane.b32.xlu0 %v360, 24
        %v1115 = vpop.permute.xlu0 %1114
        %1116 = vrot.lane.b32.xlu0 %v290, 24
        %v1117 = vpop.permute.xlu0 %1116
        %1118 = vrot.lane.b32.xlu0 %v361, 24
        %v1119 = vpop.permute.xlu0 %1118
        %1120 = vrot.lane.b32.xlu0 %v293, 24
        %v1121 = vpop.permute.xlu0 %1120
        %1122 = vrot.lane.b32.xlu0 %v362, 24
        %v1123 = vpop.permute.xlu0 %1122
        %1124 = vrot.lane.b32.xlu0 %v296, 24
        %v1125 = vpop.permute.xlu0 %1124
        %1126 = vrot.lane.b32.xlu0 %v346, 24
        %v1127 = vpop.permute.xlu0 %1126
        %1128 = vrot.lane.b32.xlu0 %v248, 24
        %v1129 = vpop.permute.xlu0 %1128
        %1162 = vrot.lane.b32.xlu0 %v425, 28
        %v1163 = vpop.permute.xlu0 %1162
        %1164 = vrot.lane.b32.xlu0 %v427, 28
        %v1165 = vpop.permute.xlu0 %1164
        %1166 = vrot.lane.b32.xlu0 %v430, 28
        %v1167 = vpop.permute.xlu0 %1166
        %1168 = vrot.lane.b32.xlu0 %v432, 28
        %v1169 = vpop.permute.xlu0 %1168
        %1170 = vrot.lane.b32.xlu0 %v435, 28
        %v1171 = vpop.permute.xlu0 %1170
        %1172 = vrot.lane.b32.xlu0 %v437, 28
        %v1173 = vpop.permute.xlu0 %1172
        %1174 = vrot.lane.b32.xlu0 %v440, 28
        %v1175 = vpop.permute.xlu0 %1174
        %1176 = vrot.lane.b32.xlu0 %v442, 28
        %v1177 = vpop.permute.xlu0 %1176
        %1178 = vrot.lane.b32.xlu0 %v445, 28
        %v1179 = vpop.permute.xlu0 %1178
        %1180 = vrot.lane.b32.xlu0 %v447, 28
        %v1181 = vpop.permute.xlu0 %1180
        %1182 = vrot.lane.b32.xlu0 %v450, 28
        %v1183 = vpop.permute.xlu0 %1182
        %1184 = vrot.lane.b32.xlu0 %v452, 28
        %v1185 = vpop.permute.xlu0 %1184
        %1186 = vrot.lane.b32.xlu0 %v455, 28
        %v1187 = vpop.permute.xlu0 %1186
        %1188 = vrot.lane.b32.xlu0 %v457, 28
        %v1189 = vpop.permute.xlu0 %1188
        %1190 = vrot.lane.b32.xlu0 %v460, 28
        %v1191 = vpop.permute.xlu0 %1190
        %1192 = vrot.lane.b32.xlu0 %v462, 28
        %v1193 = vpop.permute.xlu0 %1192
        %1194 = vrot.lane.b32.xlu0 %v465, 28
        %v1195 = vpop.permute.xlu0 %1194
        %1196 = vrot.lane.b32.xlu0 %v467, 28
        %v1197 = vpop.permute.xlu0 %1196
        %1198 = vrot.lane.b32.xlu0 %v470, 28
        %v1199 = vpop.permute.xlu0 %1198
        %1200 = vrot.lane.b32.xlu0 %v472, 28
        %v1201 = vpop.permute.xlu0 %1200
        %1202 = vrot.lane.b32.xlu0 %v475, 28
        %v1203 = vpop.permute.xlu0 %1202
        %1204 = vrot.lane.b32.xlu0 %v477, 28
        %v1205 = vpop.permute.xlu0 %1204
        %1206 = vrot.lane.b32.xlu0 %v480, 28
        %v1207 = vpop.permute.xlu0 %1206
        %1208 = vrot.lane.b32.xlu0 %v482, 28
        %v1209 = vpop.permute.xlu0 %1208
        %1210 = vrot.lane.b32.xlu0 %v485, 28
        %v1211 = vpop.permute.xlu0 %1210
        %1212 = vrot.lane.b32.xlu0 %v487, 28
        %v1213 = vpop.permute.xlu0 %1212
        %1214 = vrot.lane.b32.xlu0 %v490, 28
        %v1215 = vpop.permute.xlu0 %1214
        %1216 = vrot.lane.b32.xlu0 %v492, 28
        %v1217 = vpop.permute.xlu0 %1216
        %1218 = vrot.lane.b32.xlu0 %v578, 28
        %v1219 = vpop.permute.xlu0 %1218
        %1220 = vrot.lane.b32.xlu0 %v580, 28
        %v1221 = vpop.permute.xlu0 %1220
        %1222 = vrot.lane.b32.xlu0 %v415, 28
        %v1223 = vpop.permute.xlu0 %1222
        %1224 = vrot.lane.b32.xlu0 %v417, 28
        %v1225 = vpop.permute.xlu0 %1224
        %1258 = vrot.lane.b32.xlu0 %v506, 32
        %v1259 = vpop.permute.xlu0 %1258
        %1260 = vrot.lane.b32.xlu0 %v508, 32
        %v1261 = vpop.permute.xlu0 %1260
        %1262 = vrot.lane.b32.xlu0 %v511, 32
        %v1263 = vpop.permute.xlu0 %1262
        %1264 = vrot.lane.b32.xlu0 %v513, 32
        %v1265 = vpop.permute.xlu0 %1264
        %1266 = vrot.lane.b32.xlu0 %v516, 32
        %v1267 = vpop.permute.xlu0 %1266
        %1268 = vrot.lane.b32.xlu0 %v518, 32
        %v1269 = vpop.permute.xlu0 %1268
        %1270 = vrot.lane.b32.xlu0 %v521, 32
        %v1271 = vpop.permute.xlu0 %1270
        %1272 = vrot.lane.b32.xlu0 %v523, 32
        %v1273 = vpop.permute.xlu0 %1272
        %1274 = vrot.lane.b32.xlu0 %v526, 32
        %v1275 = vpop.permute.xlu0 %1274
        %1276 = vrot.lane.b32.xlu0 %v528, 32
        %v1277 = vpop.permute.xlu0 %1276
        %1278 = vrot.lane.b32.xlu0 %v531, 32
        %v1279 = vpop.permute.xlu0 %1278
        %1280 = vrot.lane.b32.xlu0 %v533, 32
        %v1281 = vpop.permute.xlu0 %1280
        %1282 = vrot.lane.b32.xlu0 %v536, 32
        %v1283 = vpop.permute.xlu0 %1282
        %1284 = vrot.lane.b32.xlu0 %v538, 32
        %v1285 = vpop.permute.xlu0 %1284
        %1286 = vrot.lane.b32.xlu0 %v541, 32
        %v1287 = vpop.permute.xlu0 %1286
        %1288 = vrot.lane.b32.xlu0 %v543, 32
        %v1289 = vpop.permute.xlu0 %1288
        %1290 = vrot.lane.b32.xlu0 %v546, 32
        %v1291 = vpop.permute.xlu0 %1290
        %1292 = vrot.lane.b32.xlu0 %v548, 32
        %v1293 = vpop.permute.xlu0 %1292
        %1294 = vrot.lane.b32.xlu0 %v551, 32
        %v1295 = vpop.permute.xlu0 %1294
        %1296 = vrot.lane.b32.xlu0 %v553, 32
        %v1297 = vpop.permute.xlu0 %1296
        %1298 = vrot.lane.b32.xlu0 %v556, 32
        %v1299 = vpop.permute.xlu0 %1298
        %1300 = vrot.lane.b32.xlu0 %v558, 32
        %v1301 = vpop.permute.xlu0 %1300
        %1302 = vrot.lane.b32.xlu0 %v561, 32
        %v1303 = vpop.permute.xlu0 %1302
        %1304 = vrot.lane.b32.xlu0 %v563, 32
        %v1305 = vpop.permute.xlu0 %1304
        %1306 = vrot.lane.b32.xlu0 %v566, 32
        %v1307 = vpop.permute.xlu0 %1306
        %1308 = vrot.lane.b32.xlu0 %v568, 32
        %v1309 = vpop.permute.xlu0 %1308
        %1310 = vrot.lane.b32.xlu0 %v571, 32
        %v1311 = vpop.permute.xlu0 %1310
        %1312 = vrot.lane.b32.xlu0 %v573, 32
        %v1313 = vpop.permute.xlu0 %1312
        %1314 = vrot.lane.b32.xlu0 %v583, 32
        %v1315 = vpop.permute.xlu0 %1314
        %1316 = vrot.lane.b32.xlu0 %v585, 32
        %v1317 = vpop.permute.xlu0 %1316
        %1318 = vrot.lane.b32.xlu0 %v496, 32
        %v1319 = vpop.permute.xlu0 %1318
        %1320 = vrot.lane.b32.xlu0 %v498, 32
        %v1321 = vpop.permute.xlu0 %1320
        %vm1354 = vcmask 31744
        %v1355 = vsel %vm1354, %v346, %v587
        %v1356 = vsel %vm1354, %v248, %v589
        %v1357 = vsel %vm1354, %v347, %v591
        %v1358 = vsel %vm1354, %v251, %v593
        %v1359 = vsel %vm1354, %v348, %v595
        %v1360 = vsel %vm1354, %v254, %v597
        %v1361 = vsel %vm1354, %v349, %v599
        %v1362 = vsel %vm1354, %v257, %v601
        %v1363 = vsel %vm1354, %v350, %v603
        %v1364 = vsel %vm1354, %v260, %v605
        %v1365 = vsel %vm1354, %v351, %v607
        %v1366 = vsel %vm1354, %v263, %v609
        %v1367 = vsel %vm1354, %v352, %v611
        %v1368 = vsel %vm1354, %v266, %v613
        %v1369 = vsel %vm1354, %v353, %v615
        %v1370 = vsel %vm1354, %v269, %v617
        %v1371 = vsel %vm1354, %v354, %v619
        %v1372 = vsel %vm1354, %v272, %v621
        %v1373 = vsel %vm1354, %v355, %v623
        %v1374 = vsel %vm1354, %v275, %v625
        %v1375 = vsel %vm1354, %v356, %v627
        %v1376 = vsel %vm1354, %v278, %v629
        %v1377 = vsel %vm1354, %v357, %v631
        %v1378 = vsel %vm1354, %v281, %v633
        %v1379 = vsel %vm1354, %v358, %v635
        %v1380 = vsel %vm1354, %v284, %v637
        %v1381 = vsel %vm1354, %v359, %v639
        %v1382 = vsel %vm1354, %v287, %v641
        %v1383 = vsel %vm1354, %v360, %v643
        %v1384 = vsel %vm1354, %v290, %v645
        %v1385 = vsel %vm1354, %v361, %v647
        %v1386 = vsel %vm1354, %v293, %v649
        %vm1387 = vcmask 64512
        %v1388 = vsel %vm1387, %v1355, %v683
        %v1389 = vsel %vm1387, %v1356, %v685
        %v1390 = vsel %vm1387, %v1357, %v687
        %v1391 = vsel %vm1387, %v1358, %v689
        %v1392 = vsel %vm1387, %v1359, %v691
        %v1393 = vsel %vm1387, %v1360, %v693
        %v1394 = vsel %vm1387, %v1361, %v695
        %v1395 = vsel %vm1387, %v1362, %v697
        %v1396 = vsel %vm1387, %v1363, %v699
        %v1397 = vsel %vm1387, %v1364, %v701
        %v1398 = vsel %vm1387, %v1365, %v703
        %v1399 = vsel %vm1387, %v1366, %v705
        %v1400 = vsel %vm1387, %v1367, %v707
        %v1401 = vsel %vm1387, %v1368, %v709
        %v1402 = vsel %vm1387, %v1369, %v711
        %v1403 = vsel %vm1387, %v1370, %v713
        %v1404 = vsel %vm1387, %v1371, %v715
        %v1405 = vsel %vm1387, %v1372, %v717
        %v1406 = vsel %vm1387, %v1373, %v719
        %v1407 = vsel %vm1387, %v1374, %v721
        %v1408 = vsel %vm1387, %v1375, %v723
        %v1409 = vsel %vm1387, %v1376, %v725
        %v1410 = vsel %vm1387, %v1377, %v727
        %v1411 = vsel %vm1387, %v1378, %v729
        %v1412 = vsel %vm1387, %v1379, %v731
        %v1413 = vsel %vm1387, %v1380, %v733
        %v1414 = vsel %vm1387, %v1381, %v735
        %v1415 = vsel %vm1387, %v1382, %v737
        %v1416 = vsel %vm1387, %v1383, %v739
        %v1417 = vsel %vm1387, %v1384, %v741
        %v1418 = vsel %vm1387, %v1385, %v743
        %v1419 = vsel %vm1387, %v1386, %v745
        %vm1420 = vcmask 97280
        %v1421 = vsel %vm1420, %v1388, %v779
        %v1422 = vsel %vm1420, %v1389, %v781
        %v1423 = vsel %vm1420, %v1390, %v783
        %v1424 = vsel %vm1420, %v1391, %v785
        %v1425 = vsel %vm1420, %v1392, %v787
        %v1426 = vsel %vm1420, %v1393, %v789
        %v1427 = vsel %vm1420, %v1394, %v791
        %v1428 = vsel %vm1420, %v1395, %v793
        %v1429 = vsel %vm1420, %v1396, %v795
        %v1430 = vsel %vm1420, %v1397, %v797
        %v1431 = vsel %vm1420, %v1398, %v799
        %v1432 = vsel %vm1420, %v1399, %v801
        %v1433 = vsel %vm1420, %v1400, %v803
        %v1434 = vsel %vm1420, %v1401, %v805
        %v1435 = vsel %vm1420, %v1402, %v807
        %v1436 = vsel %vm1420, %v1403, %v809
        %v1437 = vsel %vm1420, %v1404, %v811
        %v1438 = vsel %vm1420, %v1405, %v813
        %v1439 = vsel %vm1420, %v1406, %v815
        %v1440 = vsel %vm1420, %v1407, %v817
        %v1441 = vsel %vm1420, %v1408, %v819
        %v1442 = vsel %vm1420, %v1409, %v821
        %v1443 = vsel %vm1420, %v1410, %v823
        %v1444 = vsel %vm1420, %v1411, %v825
        %v1445 = vsel %vm1420, %v1412, %v827
        %v1446 = vsel %vm1420, %v1413, %v829
        %v1447 = vsel %vm1420, %v1414, %v831
        %v1448 = vsel %vm1420, %v1415, %v833
        %v1449 = vsel %vm1420, %v1416, %v835
        %v1450 = vsel %vm1420, %v1417, %v837
        %v1451 = vsel %vm1420, %v1418, %v839
        %v1452 = vsel %vm1420, %v1419, %v841
        %vm1453 = vcmask 130048
        %v1454 = vsel %vm1453, %v1421, %v875
        %v1455 = vsel %vm1453, %v1422, %v877
        %v1456 = vsel %vm1453, %v1423, %v879
        %v1457 = vsel %vm1453, %v1424, %v881
        %v1458 = vsel %vm1453, %v1425, %v883
        %v1459 = vsel %vm1453, %v1426, %v885
        %v1460 = vsel %vm1453, %v1427, %v887
        %v1461 = vsel %vm1453, %v1428, %v889
        %v1462 = vsel %vm1453, %v1429, %v891
        %v1463 = vsel %vm1453, %v1430, %v893
        %v1464 = vsel %vm1453, %v1431, %v895
        %v1465 = vsel %vm1453, %v1432, %v897
        %v1466 = vsel %vm1453, %v1433, %v899
        %v1467 = vsel %vm1453, %v1434, %v901
        %v1468 = vsel %vm1453, %v1435, %v903
        %v1469 = vsel %vm1453, %v1436, %v905
        %v1470 = vsel %vm1453, %v1437, %v907
        %v1471 = vsel %vm1453, %v1438, %v909
        %v1472 = vsel %vm1453, %v1439, %v911
        %v1473 = vsel %vm1453, %v1440, %v913
        %v1474 = vsel %vm1453, %v1441, %v915
        %v1475 = vsel %vm1453, %v1442, %v917
        %v1476 = vsel %vm1453, %v1443, %v919
        %v1477 = vsel %vm1453, %v1444, %v921
        %v1478 = vsel %vm1453, %v1445, %v923
        %v1479 = vsel %vm1453, %v1446, %v925
        %v1480 = vsel %vm1453, %v1447, %v927
        %v1481 = vsel %vm1453, %v1448, %v929
        %v1482 = vsel %vm1453, %v1449, %v931
        %v1483 = vsel %vm1453, %v1450, %v933
        %v1484 = vsel %vm1453, %v1451, %v935
        %v1485 = vsel %vm1453, %v1452, %v937
        %vm1486 = vcmask 162816
        %v1487 = vsel %vm1486, %v1454, %v971
        %v1488 = vsel %vm1486, %v1455, %v973
        %v1489 = vsel %vm1486, %v1456, %v975
        %v1490 = vsel %vm1486, %v1457, %v977
        %v1491 = vsel %vm1486, %v1458, %v979
        %v1492 = vsel %vm1486, %v1459, %v981
        %v1493 = vsel %vm1486, %v1460, %v983
        %v1494 = vsel %vm1486, %v1461, %v985
        %v1495 = vsel %vm1486, %v1462, %v987
        %v1496 = vsel %vm1486, %v1463, %v989
        %v1497 = vsel %vm1486, %v1464, %v991
        %v1498 = vsel %vm1486, %v1465, %v993
        %v1499 = vsel %vm1486, %v1466, %v995
        %v1500 = vsel %vm1486, %v1467, %v997
        %v1501 = vsel %vm1486, %v1468, %v999
        %v1502 = vsel %vm1486, %v1469, %v1001
        %v1503 = vsel %vm1486, %v1470, %v1003
        %v1504 = vsel %vm1486, %v1471, %v1005
        %v1505 = vsel %vm1486, %v1472, %v1007
        %v1506 = vsel %vm1486, %v1473, %v1009
        %v1507 = vsel %vm1486, %v1474, %v1011
        %v1508 = vsel %vm1486, %v1475, %v1013
        %v1509 = vsel %vm1486, %v1476, %v1015
        %v1510 = vsel %vm1486, %v1477, %v1017
        %v1511 = vsel %vm1486, %v1478, %v1019
        %v1512 = vsel %vm1486, %v1479, %v1021
        %v1513 = vsel %vm1486, %v1480, %v1023
        %v1514 = vsel %vm1486, %v1481, %v1025
        %v1515 = vsel %vm1486, %v1482, %v1027
        %v1516 = vsel %vm1486, %v1483, %v1029
        %v1517 = vsel %vm1486, %v1484, %v1031
        %v1518 = vsel %vm1486, %v1485, %v1033
        %vm1519 = vcmask 195584
        %v1520 = vsel %vm1519, %v1487, %v1067
        %v1521 = vsel %vm1519, %v1488, %v1069
        %v1522 = vsel %vm1519, %v1489, %v1071
        %v1523 = vsel %vm1519, %v1490, %v1073
        %v1524 = vsel %vm1519, %v1491, %v1075
        %v1525 = vsel %vm1519, %v1492, %v1077
        %v1526 = vsel %vm1519, %v1493, %v1079
        %v1527 = vsel %vm1519, %v1494, %v1081
        %v1528 = vsel %vm1519, %v1495, %v1083
        %v1529 = vsel %vm1519, %v1496, %v1085
        %v1530 = vsel %vm1519, %v1497, %v1087
        %v1531 = vsel %vm1519, %v1498, %v1089
        %v1532 = vsel %vm1519, %v1499, %v1091
        %v1533 = vsel %vm1519, %v1500, %v1093
        %v1534 = vsel %vm1519, %v1501, %v1095
        %v1535 = vsel %vm1519, %v1502, %v1097
        %v1536 = vsel %vm1519, %v1503, %v1099
        %v1537 = vsel %vm1519, %v1504, %v1101
        %v1538 = vsel %vm1519, %v1505, %v1103
        %v1539 = vsel %vm1519, %v1506, %v1105
        %v1540 = vsel %vm1519, %v1507, %v1107
        %v1541 = vsel %vm1519, %v1508, %v1109
        %v1542 = vsel %vm1519, %v1509, %v1111
        %v1543 = vsel %vm1519, %v1510, %v1113
        %v1544 = vsel %vm1519, %v1511, %v1115
        %v1545 = vsel %vm1519, %v1512, %v1117
        %v1546 = vsel %vm1519, %v1513, %v1119
        %v1547 = vsel %vm1519, %v1514, %v1121
        %v1548 = vsel %vm1519, %v1515, %v1123
        %v1549 = vsel %vm1519, %v1516, %v1125
        %v1550 = vsel %vm1519, %v1517, %v1127
        %v1551 = vsel %vm1519, %v1518, %v1129
        %vm1552 = vcmask 228352
        %v1553 = vsel %vm1552, %v1520, %v1163
        %v1554 = vsel %vm1552, %v1521, %v1165
        %v1555 = vsel %vm1552, %v1522, %v1167
        %v1556 = vsel %vm1552, %v1523, %v1169
        %v1557 = vsel %vm1552, %v1524, %v1171
        %v1558 = vsel %vm1552, %v1525, %v1173
        %v1559 = vsel %vm1552, %v1526, %v1175
        %v1560 = vsel %vm1552, %v1527, %v1177
        %v1561 = vsel %vm1552, %v1528, %v1179
        %v1562 = vsel %vm1552, %v1529, %v1181
        %v1563 = vsel %vm1552, %v1530, %v1183
        %v1564 = vsel %vm1552, %v1531, %v1185
        %v1565 = vsel %vm1552, %v1532, %v1187
        %v1566 = vsel %vm1552, %v1533, %v1189
        %v1567 = vsel %vm1552, %v1534, %v1191
        %v1568 = vsel %vm1552, %v1535, %v1193
        %v1569 = vsel %vm1552, %v1536, %v1195
        %v1570 = vsel %vm1552, %v1537, %v1197
        %v1571 = vsel %vm1552, %v1538, %v1199
        %v1572 = vsel %vm1552, %v1539, %v1201
        %v1573 = vsel %vm1552, %v1540, %v1203
        %v1574 = vsel %vm1552, %v1541, %v1205
        %v1575 = vsel %vm1552, %v1542, %v1207
        %v1576 = vsel %vm1552, %v1543, %v1209
        %v1577 = vsel %vm1552, %v1544, %v1211
        %v1578 = vsel %vm1552, %v1545, %v1213
        %v1579 = vsel %vm1552, %v1546, %v1215
        %v1580 = vsel %vm1552, %v1547, %v1217
        %v1581 = vsel %vm1552, %v1548, %v1219
        %v1582 = vsel %vm1552, %v1549, %v1221
        %v1583 = vsel %vm1552, %v1550, %v1223
        %v1584 = vsel %vm1552, %v1551, %v1225
        %vm1585 = vcmask 261120
        %v1586 = vsel %vm1585, %v1553, %v1259
        %v1587 = vsel %vm1585, %v1554, %v1261
        %v1588 = vsel %vm1585, %v1555, %v1263
        %v1589 = vsel %vm1585, %v1556, %v1265
        %v1590 = vsel %vm1585, %v1557, %v1267
        %v1591 = vsel %vm1585, %v1558, %v1269
        %v1592 = vsel %vm1585, %v1559, %v1271
        %v1593 = vsel %vm1585, %v1560, %v1273
        %v1594 = vsel %vm1585, %v1561, %v1275
        %v1595 = vsel %vm1585, %v1562, %v1277
        %v1596 = vsel %vm1585, %v1563, %v1279
        %v1597 = vsel %vm1585, %v1564, %v1281
        %v1598 = vsel %vm1585, %v1565, %v1283
        %v1599 = vsel %vm1585, %v1566, %v1285
        %v1600 = vsel %vm1585, %v1567, %v1287
        %v1601 = vsel %vm1585, %v1568, %v1289
        %v1602 = vsel %vm1585, %v1569, %v1291
        %v1603 = vsel %vm1585, %v1570, %v1293
        %v1604 = vsel %vm1585, %v1571, %v1295
        %v1605 = vsel %vm1585, %v1572, %v1297
        %v1606 = vsel %vm1585, %v1573, %v1299
        %v1607 = vsel %vm1585, %v1574, %v1301
        %v1608 = vsel %vm1585, %v1575, %v1303
        %v1609 = vsel %vm1585, %v1576, %v1305
        %v1610 = vsel %vm1585, %v1577, %v1307
        %v1611 = vsel %vm1585, %v1578, %v1309
        %v1612 = vsel %vm1585, %v1579, %v1311
        %v1613 = vsel %vm1585, %v1580, %v1313
        %v1614 = vsel %vm1585, %v1581, %v1315
        %v1615 = vsel %vm1585, %v1582, %v1317
        %v1616 = vsel %vm1585, %v1583, %v1319
        %v1617 = vsel %vm1585, %v1584, %v1321
        %v1618 = vpack.c.bf16 %v1587, %v1586
        %v1619 = vpack.c.bf16 %v1589, %v1588
        %v1620 = vpack.c.bf16 %v1591, %v1590
        %v1621 = vpack.c.bf16 %v1593, %v1592
        %v1622 = vpack.c.bf16 %v1595, %v1594
        %v1623 = vpack.c.bf16 %v1597, %v1596
        %v1624 = vpack.c.bf16 %v1599, %v1598
        %v1625 = vpack.c.bf16 %v1601, %v1600
        %v1626 = vpack.c.bf16 %v1603, %v1602
        %v1627 = vpack.c.bf16 %v1605, %v1604
        %v1628 = vpack.c.bf16 %v1607, %v1606
        %v1629 = vpack.c.bf16 %v1609, %v1608
        %v1630 = vpack.c.bf16 %v1611, %v1610
        %v1631 = vpack.c.bf16 %v1613, %v1612
        %v1632 = vpack.c.bf16 %v1615, %v1614
        %v1633 = vpack.c.bf16 %v1617, %v1616
        %v1634 = vld [vmem:[%s1] sm:$0xf]
        %v1635 = vld [vmem:[%s1 + $0x4] sm:$0xf]
        %v1636 = vld [vmem:[%s1 + $0x8] sm:$0xf]
        %v1637 = vld [vmem:[%s1 + $0xc] sm:$0xf]
        %v1638 = vld [vmem:[%s1 + $0x10] sm:$0x3]
        %v1644 = vunpack.c.l.b16 %v1634
        %v1645 = vunpack.c.l.b16 %v1635
        %v1646 = vunpack.c.l.b16 %v1636
        %v1647 = vunpack.c.l.b16 %v1637
        %v1648 = vunpack.c.l.b16 %v1638
        %v1649 = vpack.c.b16 %v1645, %v1644
        %v1650 = vpack.c.b16 %v1647, %v1646
        %v1651 = vpack.c.b16 %v1648, %v1648
        %vm1654 = vcmask 293888
        %v1656 = vsel %vm1654, %v1618, 0
        %v1659 = vsel %vm1654, %v1619, 0
        %v1662 = vsel %vm1654, %v1620, 0
        %v1665 = vsel %vm1654, %v1621, 0
        %v1668 = vsel %vm1654, %v1622, 0
        %v1671 = vsel %vm1654, %v1623, 0
        %v1674 = vsel %vm1654, %v1624, 0
        %v1677 = vsel %vm1654, %v1625, 0
        %v1680 = vsel %vm1654, %v1626, 0
        %v1683 = vsel %vm1654, %v1627, 0
        %v1686 = vsel %vm1654, %v1628, 0
        %v1689 = vsel %vm1654, %v1629, 0
        %v1692 = vsel %vm1654, %v1630, 0
        %v1695 = vsel %vm1654, %v1631, 0
        %v1698 = vsel %vm1654, %v1632, 0
        %v1701 = vsel %vm1654, %v1633, 0
        %vm1703 = vcmask 1041408
        %v1705 = vsel %vm1703, %v1651, 0
        %1707 = vmatprep.subr.bf16.mxu0 0
        %1708 = vmatpush1.bf16.msra.mxu0 %v1649
        %1709 = vmatprep.subr.bf16.mxu0 0
        %1710 = vmatpush1.bf16.msra.mxu0 %v1650
        %1711 = vmatprep.subr.bf16.mxu0 0
        %1712 = vmatpush1.bf16.msra.mxu0 %v1705
        %1713 = vmatprep.subr.bf16.mxu0 0
        %1714 = vmatpush1.bf16.msra.mxu0 0
        %1715 = vmatprep.subr.bf16.mxu0 0
        %1716 = vmatpush1.bf16.msra.mxu0 0
        %1717 = vmatprep.subr.bf16.mxu0 0
        %1718 = vmatpush1.bf16.msra.mxu0 0
        %1719 = vmatprep.subr.bf16.mxu0 0
        %1720 = vmatpush1.bf16.msra.mxu0 0
        %1721 = vmatprep.subr.bf16.mxu0 0
        %1722 = vmatpush1.bf16.msra.mxu0 0
        %1723 = vmatprep.subr.bf16.mxu0 0
        %1724 = vmatpush1.bf16.msra.mxu0 0
        %1725 = vmatprep.subr.bf16.mxu0 0
        %1726 = vmatpush1.bf16.msra.mxu0 0
        %1727 = vmatprep.subr.bf16.mxu0 0
        %1728 = vmatpush1.bf16.msra.mxu0 0
        %1729 = vmatprep.subr.bf16.mxu0 0
        %1730 = vmatpush1.bf16.msra.mxu0 0
        %1731 = vmatprep.subr.bf16.mxu0 0
        %1732 = vmatpush1.bf16.msra.mxu0 0
        %1733 = vmatprep.subr.bf16.mxu0 0
        %1734 = vmatpush1.bf16.msra.mxu0 0
        %1735 = vmatprep.subr.bf16.mxu0 0
        %1736 = vmatpush1.bf16.msra.mxu0 0
        %1737 = vmatprep.subr.bf16.mxu0 0
        %1738 = vmatpush1.bf16.msra.mxu0 0
        %1739 = vmatprep.mubr.bf16.mxu0 0
        %1740 = vmatmul.mubr.bf16.gmra.mrb[0].mxu0 %v1656
        %v1741 = vpop.f32.mrb[0].mxu0
        %v1742 = vadd.f32 0.0, %v1741
        %v1743 = vpop.f32.mrb[0].mxu0
        %v1744 = vpop.f32.mrb[0].mxu0
        %v1745 = vadd.f32 0.0, %v1744
        %v1746 = vpop.f32.mrb[0].mxu0
        %1747 = vmatprep.mubr.bf16.mxu0 0
        %1748 = vmatmul.mubr.bf16.gmra.mrb[0].mxu0 %v1659
        %v1749 = vpop.f32.mrb[0].mxu0
        %v1750 = vadd.f32 0.0, %v1749
        %v1751 = vpop.f32.mrb[0].mxu0
        %v1752 = vpop.f32.mrb[0].mxu0
        %v1753 = vadd.f32 0.0, %v1752
        %v1754 = vpop.f32.mrb[0].mxu0
        %1755 = vmatprep.mubr.bf16.mxu0 0
        %1756 = vmatmul.mubr.bf16.gmra.mrb[0].mxu0 %v1662
        %v1757 = vpop.f32.mrb[0].mxu0
        %v1758 = vadd.f32 0.0, %v1757
        %v1759 = vpop.f32.mrb[0].mxu0
        %v1760 = vpop.f32.mrb[0].mxu0
        %v1761 = vadd.f32 0.0, %v1760
        %v1762 = vpop.f32.mrb[0].mxu0
        %1763 = vmatprep.mubr.bf16.mxu0 0
        %1764 = vmatmul.mubr.bf16.gmra.mrb[0].mxu0 %v1665
        %v1765 = vpop.f32.mrb[0].mxu0
        %v1766 = vadd.f32 0.0, %v1765
        %v1767 = vpop.f32.mrb[0].mxu0
        %v1768 = vpop.f32.mrb[0].mxu0
        %v1769 = vadd.f32 0.0, %v1768
        %v1770 = vpop.f32.mrb[0].mxu0
        %1771 = vmatprep.mubr.bf16.mxu0 0
        %1772 = vmatmul.mubr.bf16.gmra.mrb[0].mxu0 %v1668
        %v1773 = vpop.f32.mrb[0].mxu0
        %v1774 = vadd.f32 0.0, %v1773
        %v1775 = vpop.f32.mrb[0].mxu0
        %v1776 = vpop.f32.mrb[0].mxu0
        %v1777 = vadd.f32 0.0, %v1776
        %v1778 = vpop.f32.mrb[0].mxu0
        %1779 = vmatprep.mubr.bf16.mxu0 0
        %1780 = vmatmul.mubr.bf16.gmra.mrb[0].mxu0 %v1671
        %v1781 = vpop.f32.mrb[0].mxu0
        %v1782 = vadd.f32 0.0, %v1781
        %v1783 = vpop.f32.mrb[0].mxu0
        %v1784 = vpop.f32.mrb[0].mxu0
        %v1785 = vadd.f32 0.0, %v1784
        %v1786 = vpop.f32.mrb[0].mxu0
        %1787 = vmatprep.mubr.bf16.mxu0 0
        %1788 = vmatmul.mubr.bf16.gmra.mrb[0].mxu0 %v1674
        %v1789 = vpop.f32.mrb[0].mxu0
        %v1790 = vadd.f32 0.0, %v1789
        %v1791 = vpop.f32.mrb[0].mxu0
        %v1792 = vpop.f32.mrb[0].mxu0
        %v1793 = vadd.f32 0.0, %v1792
        %v1794 = vpop.f32.mrb[0].mxu0
        %1795 = vmatprep.mubr.bf16.mxu0 0
        %1796 = vmatmul.mubr.bf16.gmra.mrb[0].mxu0 %v1677
        %v1797 = vpop.f32.mrb[0].mxu0
        %v1798 = vadd.f32 0.0, %v1797
        %v1799 = vpop.f32.mrb[0].mxu0
        %v1800 = vpop.f32.mrb[0].mxu0
        %v1801 = vadd.f32 0.0, %v1800
        %v1802 = vpop.f32.mrb[0].mxu0
        %1803 = vmatprep.mubr.bf16.mxu0 0
        %1804 = vmatmul.mubr.bf16.gmra.mrb[0].mxu0 %v1680
        %v1805 = vpop.f32.mrb[0].mxu0
        %v1806 = vadd.f32 0.0, %v1805
        %v1807 = vpop.f32.mrb[0].mxu0
        %v1808 = vpop.f32.mrb[0].mxu0
        %v1809 = vadd.f32 0.0, %v1808
        %v1810 = vpop.f32.mrb[0].mxu0
        %1811 = vmatprep.mubr.bf16.mxu0 0
        %1812 = vmatmul.mubr.bf16.gmra.mrb[0].mxu0 %v1683
        %v1813 = vpop.f32.mrb[0].mxu0
        %v1814 = vadd.f32 0.0, %v1813
        %v1815 = vpop.f32.mrb[0].mxu0
        %v1816 = vpop.f32.mrb[0].mxu0
        %v1817 = vadd.f32 0.0, %v1816
        %v1818 = vpop.f32.mrb[0].mxu0
        %1819 = vmatprep.mubr.bf16.mxu0 0
        %1820 = vmatmul.mubr.bf16.gmra.mrb[0].mxu0 %v1686
        %v1821 = vpop.f32.mrb[0].mxu0
        %v1822 = vadd.f32 0.0, %v1821
        %v1823 = vpop.f32.mrb[0].mxu0
        %v1824 = vpop.f32.mrb[0].mxu0
        %v1825 = vadd.f32 0.0, %v1824
        %v1826 = vpop.f32.mrb[0].mxu0
        %1827 = vmatprep.mubr.bf16.mxu0 0
        %1828 = vmatmul.mubr.bf16.gmra.mrb[0].mxu0 %v1689
        %v1829 = vpop.f32.mrb[0].mxu0
        %v1830 = vadd.f32 0.0, %v1829
        %v1831 = vpop.f32.mrb[0].mxu0
        %v1832 = vpop.f32.mrb[0].mxu0
        %v1833 = vadd.f32 0.0, %v1832
        %v1834 = vpop.f32.mrb[0].mxu0
        %1835 = vmatprep.mubr.bf16.mxu0 0
        %1836 = vmatmul.mubr.bf16.gmra.mrb[0].mxu0 %v1692
        %v1837 = vpop.f32.mrb[0].mxu0
        %v1838 = vadd.f32 0.0, %v1837
        %v1839 = vpop.f32.mrb[0].mxu0
        %v1840 = vpop.f32.mrb[0].mxu0
        %v1841 = vadd.f32 0.0, %v1840
        %v1842 = vpop.f32.mrb[0].mxu0
        %1843 = vmatprep.mubr.bf16.mxu0 0
        %1844 = vmatmul.mubr.bf16.gmra.mrb[0].mxu0 %v1695
        %v1845 = vpop.f32.mrb[0].mxu0
        %v1846 = vadd.f32 0.0, %v1845
        %v1847 = vpop.f32.mrb[0].mxu0
        %v1848 = vpop.f32.mrb[0].mxu0
        %v1849 = vadd.f32 0.0, %v1848
        %v1850 = vpop.f32.mrb[0].mxu0
        %1851 = vmatprep.mubr.bf16.mxu0 0
        %1852 = vmatmul.mubr.bf16.gmra.mrb[0].mxu0 %v1698
        %v1853 = vpop.f32.mrb[0].mxu0
        %v1854 = vadd.f32 0.0, %v1853
        %v1855 = vpop.f32.mrb[0].mxu0
        %v1856 = vpop.f32.mrb[0].mxu0
        %v1857 = vadd.f32 0.0, %v1856
        %v1858 = vpop.f32.mrb[0].mxu0
        %1859 = vmatprep.mubr.bf16.mxu0 0
        %1860 = vmatmul.mubr.bf16.gmra.mrb[0].mxu0 %v1701
        %v1861 = vpop.f32.mrb[0].mxu0
        %v1862 = vadd.f32 0.0, %v1861
        %v1863 = vpop.f32.mrb[0].mxu0
        %v1864 = vpop.f32.mrb[0].mxu0
        %v1865 = vadd.f32 0.0, %v1864
        %v1866 = vpop.f32.mrb[0].mxu0
        %1867 = vdwg.mxu0
        %1868 = vst [vmem:[%s167] sm:$0xff] %v1742
        %1869 = vst [vmem:[%s167 + $0x8] sm:$0xff] %v1745
        %1870 = vst [vmem:[%s167 + $0x10] sm:$0xff] %v1750
        %1871 = vst [vmem:[%s167 + $0x18] sm:$0xff] %v1753
        %1872 = vst [vmem:[%s167 + $0x20] sm:$0xff] %v1758
        %1873 = vst [vmem:[%s167 + $0x28] sm:$0xff] %v1761
        %1874 = vst [vmem:[%s167 + $0x30] sm:$0xff] %v1766
        %1875 = vst [vmem:[%s167 + $0x38] sm:$0xff] %v1769
        %1876 = vst [vmem:[%s167 + $0x40] sm:$0xff] %v1774
        %1877 = vst [vmem:[%s167 + $0x48] sm:$0xff] %v1777
        %1878 = vst [vmem:[%s167 + $0x50] sm:$0xff] %v1782
        %1879 = vst [vmem:[%s167 + $0x58] sm:$0xff] %v1785
        %1880 = vst [vmem:[%s167 + $0x60] sm:$0xff] %v1790
        %1881 = vst [vmem:[%s167 + $0x68] sm:$0xff] %v1793
        %1882 = vst [vmem:[%s167 + $0x70] sm:$0xff] %v1798
        %1883 = vst [vmem:[%s167 + $0x78] sm:$0xff] %v1801
        %1884 = vst [vmem:[%s167 + $0x80] sm:$0xff] %v1806
        %1885 = vst [vmem:[%s167 + $0x88] sm:$0xff] %v1809
        %1886 = vst [vmem:[%s167 + $0x90] sm:$0xff] %v1814
        %1887 = vst [vmem:[%s167 + $0x98] sm:$0xff] %v1817
        %1888 = vst [vmem:[%s167 + $0xa0] sm:$0xff] %v1822
        %1889 = vst [vmem:[%s167 + $0xa8] sm:$0xff] %v1825
        %1890 = vst [vmem:[%s167 + $0xb0] sm:$0xff] %v1830
        %1891 = vst [vmem:[%s167 + $0xb8] sm:$0xff] %v1833
        %1892 = vst [vmem:[%s167 + $0xc0] sm:$0xff] %v1838
        %1893 = vst [vmem:[%s167 + $0xc8] sm:$0xff] %v1841
        %1894 = vst [vmem:[%s167 + $0xd0] sm:$0xff] %v1846
        %1895 = vst [vmem:[%s167 + $0xd8] sm:$0xff] %v1849
        %1896 = vst [vmem:[%s167 + $0xe0] sm:$0xff] %v1854
        %1897 = vst [vmem:[%s167 + $0xe8] sm:$0xff] %v1857
        %1898 = vst [vmem:[%s167 + $0xf0] sm:$0xff] %v1862
        %1899 = vst [vmem:[%s167 + $0xf8] sm:$0xff] %v1865
        %v1900 = vadd.f32 %v1742, %v1745
        %v1901 = vadd.f32 %v1900, %v1750
        %v1902 = vadd.f32 %v1901, %v1753
        %v1903 = vadd.f32 %v1902, %v1758
        %v1904 = vadd.f32 %v1903, %v1761
        %v1905 = vadd.f32 %v1904, %v1766
        %v1906 = vadd.f32 %v1905, %v1769
        %v1907 = vadd.f32 %v1906, %v1774
        %v1908 = vadd.f32 %v1907, %v1777
        %v1909 = vadd.f32 %v1908, %v1782
        %v1910 = vadd.f32 %v1909, %v1785
        %v1911 = vadd.f32 %v1910, %v1790
        %v1912 = vadd.f32 %v1911, %v1793
        %v1913 = vadd.f32 %v1912, %v1798
        %v1914 = vadd.f32 %v1913, %v1801
        %v1915 = vadd.f32 %v1914, %v1806
        %v1916 = vadd.f32 %v1915, %v1809
        %v1917 = vadd.f32 %v1916, %v1814
        %v1918 = vadd.f32 %v1917, %v1817
        %v1919 = vadd.f32 %v1918, %v1822
        %v1920 = vadd.f32 %v1919, %v1825
        %v1921 = vadd.f32 %v1920, %v1830
        %v1922 = vadd.f32 %v1921, %v1833
        %v1923 = vadd.f32 %v1922, %v1838
        %v1924 = vadd.f32 %v1923, %v1841
        %v1925 = vadd.f32 %v1924, %v1846
        %v1926 = vadd.f32 %v1925, %v1849
        %v1927 = vadd.f32 %v1926, %v1854
        %v1928 = vadd.f32 %v1927, %v1857
        %v1929 = vadd.f32 %v1928, %v1862
        %v1930 = vadd.f32 %v1929, %v1865
        %v1931 = vrot.slane %v1930, 4
        %v1932 = vadd.f32 %v1930, %v1931
        %v1933 = vrot.slane %v1932, 2
        %v1934 = vadd.f32 %v1932, %v1933
        %v1935 = vrot.slane %v1934, 1
        %v1936 = vadd.f32 %v1934, %v1935
        %v1937 = vmul.f32 %v1742, %v1742
        %v1938 = vmul.f32 %v1745, %v1745
        %v1939 = vmul.f32 %v1750, %v1750
        %v1940 = vmul.f32 %v1753, %v1753
        %v1941 = vmul.f32 %v1758, %v1758
        %v1942 = vmul.f32 %v1761, %v1761
        %v1943 = vmul.f32 %v1766, %v1766
        %v1944 = vmul.f32 %v1769, %v1769
        %v1945 = vmul.f32 %v1774, %v1774
        %v1946 = vmul.f32 %v1777, %v1777
        %v1947 = vmul.f32 %v1782, %v1782
        %v1948 = vmul.f32 %v1785, %v1785
        %v1949 = vmul.f32 %v1790, %v1790
        %v1950 = vmul.f32 %v1793, %v1793
        %v1951 = vmul.f32 %v1798, %v1798
        %v1952 = vmul.f32 %v1801, %v1801
        %v1953 = vmul.f32 %v1806, %v1806
        %v1954 = vmul.f32 %v1809, %v1809
        %v1955 = vmul.f32 %v1814, %v1814
        %v1956 = vmul.f32 %v1817, %v1817
        %v1957 = vmul.f32 %v1822, %v1822
        %v1958 = vmul.f32 %v1825, %v1825
        %v1959 = vmul.f32 %v1830, %v1830
        %v1960 = vmul.f32 %v1833, %v1833
        %v1961 = vmul.f32 %v1838, %v1838
        %v1962 = vmul.f32 %v1841, %v1841
        %v1963 = vmul.f32 %v1846, %v1846
        %v1964 = vmul.f32 %v1849, %v1849
        %v1965 = vmul.f32 %v1854, %v1854
        %v1966 = vmul.f32 %v1857, %v1857
        %v1967 = vmul.f32 %v1862, %v1862
        %v1968 = vmul.f32 %v1865, %v1865
        %v1969 = vadd.f32 %v1937, %v1938
        %v1970 = vadd.f32 %v1969, %v1939
        %v1971 = vadd.f32 %v1970, %v1940
        %v1972 = vadd.f32 %v1971, %v1941
        %v1973 = vadd.f32 %v1972, %v1942
        %v1974 = vadd.f32 %v1973, %v1943
        %v1975 = vadd.f32 %v1974, %v1944
        %v1976 = vadd.f32 %v1975, %v1945
        %v1977 = vadd.f32 %v1976, %v1946
        %v1978 = vadd.f32 %v1977, %v1947
        %v1979 = vadd.f32 %v1978, %v1948
        %v1980 = vadd.f32 %v1979, %v1949
        %v1981 = vadd.f32 %v1980, %v1950
        %v1982 = vadd.f32 %v1981, %v1951
        %v1983 = vadd.f32 %v1982, %v1952
        %v1984 = vadd.f32 %v1983, %v1953
        %v1985 = vadd.f32 %v1984, %v1954
        %v1986 = vadd.f32 %v1985, %v1955
        %v1987 = vadd.f32 %v1986, %v1956
        %v1988 = vadd.f32 %v1987, %v1957
        %v1989 = vadd.f32 %v1988, %v1958
        %v1990 = vadd.f32 %v1989, %v1959
        %v1991 = vadd.f32 %v1990, %v1960
        %v1992 = vadd.f32 %v1991, %v1961
        %v1993 = vadd.f32 %v1992, %v1962
        %v1994 = vadd.f32 %v1993, %v1963
        %v1995 = vadd.f32 %v1994, %v1964
        %v1996 = vadd.f32 %v1995, %v1965
        %v1997 = vadd.f32 %v1996, %v1966
        %v1998 = vadd.f32 %v1997, %v1967
        %v1999 = vadd.f32 %v1998, %v1968
        %v2000 = vrot.slane %v1999, 4
        %v2001 = vadd.f32 %v1999, %v2000
        %v2002 = vrot.slane %v2001, 2
        %v2003 = vadd.f32 %v2001, %v2002
        %v2004 = vrot.slane %v2003, 1
        %v2005 = vadd.f32 %v2003, %v2004
        %v2006 = vsel %vm246, %v1936, %v2005
        %2007 = vst [vmem:[%s174] sm:$0x3] %v2006
        %s2008 = sand.u32 %s76, 1
        %s2009 = scalar_lea.sflag [#allocation3], %s2008
        %s2010 = sand.u32 %s76, 1
        %s2011 = smul.addr %s2010, 256
        %s2012 = scalar_lea.vmem [#allocation2], %s2011
        %s2013 = sand.u32 %s102, 1
        %s2014 = scalar_lea.sflag [#allocation5], %s2013
        %s2015 = sand.u32 %s102, 1
        %s2016 = smul.addr %s2015, 2
        %s2017 = scalar_lea.vmem [#allocation4], %s2016
        // Predicated region
        $region29: #{tpu_custom_call.1} parent=27 // pred_check
          %p2018 = pneg %p86
        $region30: #{tpu_custom_call.1} parent=27 // pred_check_branch
          %2020 = sbr.rel (%p2018) target = $region32
        $region31: #{tpu_custom_call.1} parent=27 // pred_region
          %s2022 = ssub.s32 4096, 4096
          %2023 = vsyncadd %s2009, %s2022
          %s2024 = smul.addr %s21, 32
          %s2025 = smul.addr %s2024, 128
          %s2026 = scalar_lea.hbm %s2, %s2025
          %s2027 = sshll.u32 %s2012, 4
          %s2028 = int_to_ptr.vmem [resolvable:$true] %s2027
          %2033 = dma.vmem_to_hbm [thread:$0]  %s2028, 4096, %s2026, %s2009, 128, 128, 8
        $region32: #{tpu_custom_call.1} parent=27 // pred_fallthru
          _
        // Predicated region
        $region33: #{tpu_custom_call.1} parent=27 // pred_check
          %p2034 = pneg %p112
        $region34: #{tpu_custom_call.1} parent=27 // pred_check_branch
          %2036 = sbr.rel (%p2034) target = $region36
        $region35: #{tpu_custom_call.1} parent=27 // pred_region
          %s2038 = ssub.s32 32, 32
          %2039 = vsyncadd %s2014, %s2038
          %s2040 = smul.addr %s21, 32
          %s2041 = scalar_lea.hbm %s3, %s2040
          %s2043 = sshll.u32 %s2017, 4
          %s2044 = int_to_ptr.vmem [resolvable:$true] %s2043
          %2046 = dma.vmem_to_hbm [thread:$0]  %s2044, 32, %s2041, %s2014
        $region36: #{tpu_custom_call.1} parent=27 // pred_fallthru
          _
      $region28: #{tpu_custom_call.1} parent=5 // pred_fallthru
        _
      %p2047 = scmp.le.s32.totalorder 2, %s16
      // Predicated region
      $region37: #{tpu_custom_call.1} parent=5 // pred_check
        %p2048 = pneg %p2047
      $region38: #{tpu_custom_call.1} parent=5 // pred_check_branch
        %2050 = sbr.rel (%p2048) target = $region40
      $region39: #{tpu_custom_call.1} parent=5 // pred_region
        %s2051 = ssub.s32 %s16, 2
        // Predicated region
        $region41: #{tpu_custom_call.1} parent=39 // pred_check
          %p2052 = pneg %p92
        $region42: #{tpu_custom_call.1} parent=39 // pred_check_branch
          %2054 = sbr.rel (%p2052) target = $region44
        $region43: #{tpu_custom_call.1} parent=39 // pred_region
          %s2055 = sand.u32 %s77, 1
          %s2056 = scalar_lea.sflag [#allocation3], %s2055
          %s2057 = sand.u32 %s77, 1
          %s2058 = smul.addr %s2057, 256
          %s2059 = scalar_lea.vmem [#allocation2], %s2058
          %2060 = dma.done %s2056, 4096
        $region44: #{tpu_custom_call.1} parent=39 // pred_fallthru
          _
        // Predicated region
        $region45: #{tpu_custom_call.1} parent=39 // pred_check
          %p2061 = pneg %p118
        $region46: #{tpu_custom_call.1} parent=39 // pred_check_branch
          %2063 = sbr.rel (%p2061) target = $region48
        $region47: #{tpu_custom_call.1} parent=39 // pred_region
          %s2064 = sand.u32 %s103, 1
          %s2065 = scalar_lea.sflag [#allocation5], %s2064
          %s2066 = sand.u32 %s103, 1
          %s2067 = smul.addr %s2066, 2
          %s2068 = scalar_lea.vmem [#allocation4], %s2067
          %2069 = dma.done %s2065, 32
        $region48: #{tpu_custom_call.1} parent=39 // pred_fallthru
          _
      $region40: #{tpu_custom_call.1} parent=5 // pred_fallthru
        _
    $region6: #{tpu_custom_call.1} parent=1 // loop_footer
      %s20 = sadd.s32 1, %s16
    $region7: #{tpu_custom_call.1} parent=1 // loop_footer_branch
      %15 = sbr.rel target = $region3
    $region8: #{tpu_custom_call.1} parent=1 // loop_exit
      _
    %2070 = vsyncpa [#allocation3], 1
    %s2071 = scalar_lea.sflag [#allocation3], 1
    %2072 = vsyncpa %s2071, 1
    %2073 = vsyncpa [#allocation5], 1
    %s2074 = scalar_lea.sflag [#allocation5], 1
    %2075 = vsyncpa %s2074, 1

</llo_original>
